<compile_context>
chip_gen: v6e
topology: v6e:2x2x1
jax: 0.10.0
libtpu: 0.0.40
codegen_flags: <defaults>
</compile_context>

<pallas_src>
import functools

import jax
import jax.numpy as jnp
from jax.experimental import pallas as pl
from jax.experimental.pallas import tpu as pltpu


# ---------------------------------------------------------------------------
# Fused kernel: all layers, both streams, one batch element per grid step.
# ---------------------------------------------------------------------------
def _net_kernel(*refs, N, M, num_layers):
    """refs = (x_ref, [wf, w2z, bias_alpha] * L, o_ref)

    x_ref      : (2*N*M, C0) f32   both streams stacked on the row axis
                                   (rows [0, NM) = ab, rows [NM, 2NM) = ba_t);
                                   batch dim squeezed by the BlockSpec.
    wf         : (Cin_l, Cmid_l + Cout_l) bf16   fused [W1 | gamma*W2x];
                 Cin_l = C0 for l==0 else 2*Cout_{l-1} (CrossConcat rows:
                 top half = own stream, bottom half = other stream).
    w2z        : (Cmid_l, Cout_l) bf16           gamma*W2z (pooled branch).
    bias_alpha : (2, Cout_l) f32                 row0 = BN beta, row1 = PReLU slope.
    o_ref      : (2, N, M*Cout_last) f32         lane-dense stacked output.
    """
    x_ref = refs[0]
    w_refs = refs[1:1 + 3 * num_layers]
    o_ref = refs[-1]

    NM = N * M
    h = x_ref[...]                                    # (2NM, C) f32, stays in VMEM

    for l in range(num_layers):
        wf_ref, w2z_ref, ba_ref = w_refs[3 * l:3 * l + 3]
        wf = wf_ref[...]                              # bf16 (cin, cmid+cout)
        w2z = w2z_ref[...]                            # bf16 (cmid, cout)
        bav = ba_ref[...]                             # f32  (2, cout)
        cmid, cout = w2z.shape
        c_half = h.shape[1]

        # ---- one wide MXU pass per LHS half (bf16 operands, f32 accumulate) --
        h_bf = h.astype(jnp.bfloat16)
        if l == 0:
            zy = jnp.dot(h_bf, wf, preferred_element_type=jnp.float32)
        else:
            # Implicit CrossConcat: own-stream half + other-stream half; the
            # "other" rows are fetched with a (cheap, XLU) sublane roll that
            # swaps the two stream halves (2*NM rows, shift NM == half swap).
            p = jnp.dot(h_bf, wf[:c_half], preferred_element_type=jnp.float32)
            q = jnp.dot(h_bf, wf[c_half:], preferred_element_type=jnp.float32)
            zy = p + pltpu.roll(q, NM, axis=0)

        z = zy[:, :cmid]                              # encoder first-linear out
        y = zy[:, cmid:]                              # x-path of second linear

        # ---- set pooling (max over target-vertex dim), matmul on the SMALL
        #      pooled tensor, broadcast the RESULT implicitly in the add ------
        z4 = z.reshape(2, N, M, cmid)
        pool_ab = jnp.max(z4[0], axis=1)              # (N, cmid) pool over M (dim -2)
        pool_ba = jnp.max(z4[1], axis=0)              # (M, cmid) pool over N (dim -3)
        pool = jnp.concatenate([pool_ab, pool_ba], axis=0)         # (N+M, cmid)
        pool_out = jnp.dot(pool.astype(jnp.bfloat16), w2z,
                           preferred_element_type=jnp.float32)     # (N+M, cout)
        pool_out = pool_out + bav[0:1, :]             # BN beta folded into tiny tensor

        alpha = bav[1:2, :].reshape(1, 1, cout)       # PReLU slope
        y4 = y.reshape(2, N, M, cout)
        a0 = y4[0] + pool_out[:N][:, None, :]         # implicit broadcast over M
        a1 = y4[1] + pool_out[N:][None, :, :]         # implicit broadcast over N
        a0 = jnp.where(a0 >= 0.0, a0, alpha * a0)     # PReLU (f32 elementwise)
        a1 = jnp.where(a1 >= 0.0, a1, alpha * a1)

        # Re-stack streams on the row axis for the next layer's shared matmul.
        h = jnp.concatenate([a0, a1], axis=0).reshape(2 * NM, cout)

    cout_last = h.shape[1]
    o_ref[...] = h.reshape(2, N, M * cout_last)       # lane-dense store


# ---------------------------------------------------------------------------
# Parameter prep: fold BN affine, fuse same-LHS weights, pack (beta, alpha),
# cast matmul weights to bf16.
# ---------------------------------------------------------------------------
def _prepare_weights(params):
    flat = []
    for (w1, w2x, w2z, gamma, beta, alpha) in params:
        g = gamma.reshape(1, -1)
        wf = jnp.concatenate([w1, w2x * g], axis=1).astype(jnp.bfloat16)
        w2z_f = (w2z * g).astype(jnp.bfloat16)
        ba = jnp.concatenate([beta.reshape(1, -1), alpha.reshape(1, -1)],
                             axis=0).astype(jnp.float32)
        flat += [wf, w2z_f, ba]
    return flat


# ---------------------------------------------------------------------------
# Wrapper: build specs, single pallas_call for the whole network.
# ---------------------------------------------------------------------------
def matching_net_forward_pallas(xab, xba_t, params):
    assert xab.shape == xba_t.shape
    B, N, M, C0 = xab.shape
    # Perf constraint: keeps all in-kernel (.., M, C) <-> (.., M*C) reshapes
    # layout-free (pad M for general shapes).
    assert M % 8 == 0
    L = len(params)
    NM = N * M
    cout_last = params[-1][1].shape[1]

    flat_w = _prepare_weights(params)

    # Stack the two streams on the row axis in the wrapper (HBM-side layout
    # plumbing is free); the kernel never concatenates its inputs.
    x_stk = jnp.concatenate(
        [xab.reshape(B, NM, C0), xba_t.reshape(B, NM, C0)], axis=1)   # (B, 2NM, C0)

    # Advisory cost estimate for the XLA scheduler.
    flops = 0
    for (w1, w2x, w2z, gamma, beta, alpha) in params:
        cin, cmid = w1.shape
        cout = w2x.shape[1]
        flops += 2 * B * (2 * NM) * cin * (cmid + cout)   # fused main matmuls
        flops += 2 * B * (N + M) * cmid * cout            # pooled branch
    weight_bytes = sum(int(w.size) * w.dtype.itemsize for w in flat_w)
    bytes_accessed = weight_bytes + 4 * (int(x_stk.size) + B * 2 * NM * cout_last)

    # Explicit VMEM budget (conservative): double-buffered in/out blocks +
    # weights + live intermediates of the widest layer.
    max_width = max([C0] + [p[0].shape[1] + p[1].shape[1] for p in params])
    vmem_est = (2 * 2 * NM * C0 * 4 + 2 * 2 * NM * cout_last * 4
                + 2 * weight_bytes + 8 * 2 * NM * max_width * 4)
    vmem_limit = int(min(64 * 1024 * 1024, max(32 * 1024 * 1024, 2 * vmem_est)))

    kernel = functools.partial(_net_kernel, N=N, M=M, num_layers=L)

    x_spec = pl.BlockSpec((None, 2 * NM, C0), lambda b: (b, 0, 0))
    w_specs = [pl.BlockSpec(w.shape, lambda b: (0, 0)) for w in flat_w]
    o_spec = pl.BlockSpec((None, 2, N, M * cout_last), lambda b: (b, 0, 0, 0))

    out = pl.pallas_call(
        kernel,
        out_shape=jax.ShapeDtypeStruct((B, 2, N, M * cout_last), jnp.float32),
        grid=(B,),
        in_specs=[x_spec] + w_specs,
        out_specs=o_spec,
        compiler_params=pltpu.CompilerParams(
            dimension_semantics=("parallel",),
            vmem_limit_bytes=vmem_limit),
        cost_estimate=pl.CostEstimate(flops=int(flops), transcendentals=0,
                                      bytes_accessed=int(bytes_accessed)),
    )(x_stk, *flat_w)

    out = out.reshape(B, 2, N, M, cout_last)
    return out[:, 0], out[:, 1]


# ---------------------------------------------------------------------------
# Pure-JAX reference (uses the ORIGINAL, unfolded f32 parameters).
# ---------------------------------------------------------------------------
def _unit_ref(x, p, dim_target):
    w1, w2x, w2z, gamma, beta, alpha = p
    z = x @ w1
    z_max = jnp.max(z, axis=dim_target, keepdims=True)
    z_b = jnp.broadcast_to(z_max, z.shape)
    h = jnp.concatenate([x, z_b], axis=-1)
    w2 = jnp.concatenate([w2x, w2z], axis=0)
    y = h @ w2
    y = y * gamma.reshape(-1) + beta.reshape(-1)
    return jnp.where(y >= 0.0, y, alpha.reshape(-1) * y)


def matching_net_forward_ref(xab, xba_t, params):
    L = len(params)
    for l, p in enumerate(params):
        xab_new = _unit_ref(xab, p, -2)      # stream0: dim_target = -2
        xba_new = _unit_ref(xba_t, p, -3)    # stream1: dim_target = -3
        xab, xba_t = xab_new, xba_new
        if l < L - 1:                        # CrossConcat interactor
            xab, xba_t = (jnp.concatenate([xab, xba_t], axis=-1),
                          jnp.concatenate([xba_t, xab], axis=-1))
    return xab, xba_t


# ---------------------------------------------------------------------------
# Deterministic parameter init (shapes follow UnitListGenerator + CrossConcat:
#   in_chs = [input_channels] + [2 * c for c in output_channels_list[:-1]]).
# ---------------------------------------------------------------------------
def init_params(key, input_channels, output_channels_list):
    in_chs = [input_channels] + [2 * c for c in output_channels_list[:-1]]
    params = []
    for l, (cin, cout) in enumerate(zip(in_chs, output_channels_list)):
        cmid = cout
        k1, k2, k3, k4, k5 = jax.random.split(jax.random.fold_in(key, l), 5)
        s1 = 1.0 / jnp.sqrt(jnp.float32(cin))
        s2 = 1.0 / jnp.sqrt(jnp.float32(cin + cmid))
        w1 = jax.random.normal(k1, (cin, cmid), jnp.float32) * s1
        w2x = jax.random.normal(k2, (cin, cout), jnp.float32) * s2
        w2z = jax.random.normal(k3, (cmid, cout), jnp.float32) * s2
        gamma = 1.0 + 0.1 * jax.random.normal(k4, (1, cout), jnp.float32)
        beta = 0.1 * jax.random.normal(k5, (1, cout), jnp.float32)
        alpha = jnp.full((1, cout), 0.25, jnp.float32)  # PReLU slope
        params.append((w1, w2x, w2z, gamma, beta, alpha))
    return params


if __name__ == "__main__":
    # small shapes: batch=2, N=M=8, per-stream input channels=4
    B, N, M, C = 2, 8, 8, 4
    output_channels_list = [32, 32, 16]

    key = jax.random.PRNGKey(0)
    kx, ky, kp = jax.random.split(key, 3)
    xab = jax.random.normal(kx, (B, N, M, C), jnp.float32)
    xba_t = jax.random.normal(ky, (B, N, M, C), jnp.float32)
    params = init_params(kp, C, output_channels_list)

    out_ab, out_ba = matching_net_forward_pallas(xab, xba_t, params)
    out_ab = jax.block_until_ready(out_ab)
    out_ba = jax.block_until_ready(out_ba)

    ref_ab, ref_ba = matching_net_forward_ref(xab, xba_t, params)
    assert out_ab.shape == (B, N, M, output_channels_list[-1])
    assert out_ba.shape == (B, N, M, output_channels_list[-1])
    # bf16 MXU operands (f32 accumulation) -> relaxed tolerance vs f32 reference
    assert jnp.allclose(out_ab, ref_ab, rtol=5e-2, atol=5e-2), \
        float(jnp.max(jnp.abs(out_ab - ref_ab)))
    assert jnp.allclose(out_ba, ref_ba, rtol=5e-2, atol=5e-2), \
        float(jnp.max(jnp.abs(out_ba - ref_ba)))

    print("KERNEL_OK")
</pallas_src>

<mosaic_0001>
module attributes {stable_mosaic.version = 11 : i64} {
  func.func @_net_kernel(%arg0: i32, %arg1: memref<1x128x4xf32, #tpu.memory_space<vmem>>, %arg2: memref<4x64xbf16, #tpu.memory_space<vmem>>, %arg3: memref<32x32xbf16, #tpu.memory_space<vmem>>, %arg4: memref<2x32xf32, #tpu.memory_space<vmem>>, %arg5: memref<64x64xbf16, #tpu.memory_space<vmem>>, %arg6: memref<32x32xbf16, #tpu.memory_space<vmem>>, %arg7: memref<2x32xf32, #tpu.memory_space<vmem>>, %arg8: memref<64x32xbf16, #tpu.memory_space<vmem>>, %arg9: memref<16x16xbf16, #tpu.memory_space<vmem>>, %arg10: memref<2x16xf32, #tpu.memory_space<vmem>>, %arg11: memref<1x2x8x128xf32, #tpu.memory_space<vmem>>) attributes {dimension_semantics = [#tpu.dimension_semantics<parallel>], iteration_bounds = array<i64: 2>, scalar_prefetch = 0 : i64, scratch_operands = 0 : i64, tpu.core_type = #tpu.core_type<tc>, window_params = [{transform_indices = @transform_0, window_bounds = array<i64: 1, 128, 4>}, {pipeline_mode = #tpu.pipeline_mode<synchronous>, transform_indices = @transform_1, window_bounds = array<i64: 4, 64>}, {pipeline_mode = #tpu.pipeline_mode<synchronous>, transform_indices = @transform_2, window_bounds = array<i64: 32, 32>}, {pipeline_mode = #tpu.pipeline_mode<synchronous>, transform_indices = @transform_3, window_bounds = array<i64: 2, 32>}, {pipeline_mode = #tpu.pipeline_mode<synchronous>, transform_indices = @transform_4, window_bounds = array<i64: 64, 64>}, {pipeline_mode = #tpu.pipeline_mode<synchronous>, transform_indices = @transform_5, window_bounds = array<i64: 32, 32>}, {pipeline_mode = #tpu.pipeline_mode<synchronous>, transform_indices = @transform_6, window_bounds = array<i64: 2, 32>}, {pipeline_mode = #tpu.pipeline_mode<synchronous>, transform_indices = @transform_7, window_bounds = array<i64: 64, 32>}, {pipeline_mode = #tpu.pipeline_mode<synchronous>, transform_indices = @transform_8, window_bounds = array<i64: 16, 16>}, {pipeline_mode = #tpu.pipeline_mode<synchronous>, transform_indices = @transform_9, window_bounds = array<i64: 2, 16>}, {transform_indices = @transform_10, window_bounds = array<i64: 1, 2, 8, 128>}]} {
    %c0 = arith.constant 0 : index
    %c0_0 = arith.constant 0 : index
    %c0_1 = arith.constant 0 : index
    %0 = vector.load %arg1[%c0, %c0_0, %c0_1] : memref<1x128x4xf32, #tpu.memory_space<vmem>>, vector<1x128x4xf32>
    %1 = vector.shape_cast %0 : vector<1x128x4xf32> to vector<128x4xf32>
    %c0_2 = arith.constant 0 : index
    %c0_3 = arith.constant 0 : index
    %2 = vector.load %arg2[%c0_2, %c0_3] : memref<4x64xbf16, #tpu.memory_space<vmem>>, vector<4x64xbf16>
    %c0_4 = arith.constant 0 : index
    %c0_5 = arith.constant 0 : index
    %3 = vector.load %arg3[%c0_4, %c0_5] : memref<32x32xbf16, #tpu.memory_space<vmem>>, vector<32x32xbf16>
    %c0_6 = arith.constant 0 : index
    %c0_7 = arith.constant 0 : index
    %4 = vector.load %arg4[%c0_6, %c0_7] : memref<2x32xf32, #tpu.memory_space<vmem>>, vector<2x32xf32>
    %5 = arith.truncf %1 : vector<128x4xf32> to vector<128x4xbf16>
    %cst = arith.constant dense<0.000000e+00> : vector<128x64xf32>
    %6 = tpu.matmul %5, %2, %cst {dimension_numbers = #tpu.dot_dimension_numbers<[1], [0], [0], [1], [0, 0, 1, 1], [], []>} : vector<128x4xbf16>, vector<4x64xbf16>, vector<128x64xf32> -> vector<128x64xf32>
    %7 = vector.extract_strided_slice %6 {offsets = [0, 0], sizes = [128, 32], strides = [1, 1]} : vector<128x64xf32> to vector<128x32xf32>
    %8 = vector.extract_strided_slice %6 {offsets = [0, 32], sizes = [128, 32], strides = [1, 1]} : vector<128x64xf32> to vector<128x32xf32>
    %9 = vector.shape_cast %7 : vector<128x32xf32> to vector<2x8x8x32xf32>
    %10 = vector.extract_strided_slice %9 {offsets = [0, 0, 0, 0], sizes = [1, 8, 8, 32], strides = [1, 1, 1, 1]} : vector<2x8x8x32xf32> to vector<1x8x8x32xf32>
    %11 = vector.shape_cast %10 : vector<1x8x8x32xf32> to vector<8x8x32xf32>
    %cst_8 = arith.constant dense<0xFF800000> : vector<8x32xf32>
    %12 = vector.multi_reduction <maximumf>, %11, %cst_8 [1] : vector<8x8x32xf32> to vector<8x32xf32>
    %13 = vector.extract_strided_slice %9 {offsets = [1, 0, 0, 0], sizes = [1, 8, 8, 32], strides = [1, 1, 1, 1]} : vector<2x8x8x32xf32> to vector<1x8x8x32xf32>
    %14 = vector.shape_cast %13 : vector<1x8x8x32xf32> to vector<8x8x32xf32>
    %cst_9 = arith.constant dense<0xFF800000> : vector<8x32xf32>
    %15 = vector.multi_reduction <maximumf>, %14, %cst_9 [0] : vector<8x8x32xf32> to vector<8x32xf32>
    %16 = tpu.concatenate %12, %15 in 0 : vector<8x32xf32>, vector<8x32xf32> -> vector<16x32xf32>
    %17 = arith.truncf %16 : vector<16x32xf32> to vector<16x32xbf16>
    %cst_10 = arith.constant dense<0.000000e+00> : vector<16x32xf32>
    %18 = tpu.matmul %17, %3, %cst_10 {dimension_numbers = #tpu.dot_dimension_numbers<[1], [0], [0], [1], [0, 0, 1, 1], [], []>} : vector<16x32xbf16>, vector<32x32xbf16>, vector<16x32xf32> -> vector<16x32xf32>
    %19 = vector.extract_strided_slice %4 {offsets = [0, 0], sizes = [1, 32], strides = [1, 1]} : vector<2x32xf32> to vector<1x32xf32>
    %20 = vector.broadcast %19 : vector<1x32xf32> to vector<16x32xf32>
    %21 = arith.addf %18, %20 : vector<16x32xf32>
    %22 = vector.extract_strided_slice %4 {offsets = [1, 0], sizes = [1, 32], strides = [1, 1]} : vector<2x32xf32> to vector<1x32xf32>
    %23 = vector.shape_cast %22 : vector<1x32xf32> to vector<1x1x32xf32>
    %24 = vector.shape_cast %8 : vector<128x32xf32> to vector<2x8x8x32xf32>
    %25 = vector.extract_strided_slice %24 {offsets = [0, 0, 0, 0], sizes = [1, 8, 8, 32], strides = [1, 1, 1, 1]} : vector<2x8x8x32xf32> to vector<1x8x8x32xf32>
    %26 = vector.shape_cast %25 : vector<1x8x8x32xf32> to vector<8x8x32xf32>
    %27 = vector.extract_strided_slice %21 {offsets = [0, 0], sizes = [8, 32], strides = [1, 1]} : vector<16x32xf32> to vector<8x32xf32>
    %28 = vector.shape_cast %27 : vector<8x32xf32> to vector<8x1x32xf32>
    %29 = vector.broadcast %28 : vector<8x1x32xf32> to vector<8x8x32xf32>
    %30 = arith.addf %26, %29 : vector<8x8x32xf32>
    %31 = vector.extract_strided_slice %24 {offsets = [1, 0, 0, 0], sizes = [1, 8, 8, 32], strides = [1, 1, 1, 1]} : vector<2x8x8x32xf32> to vector<1x8x8x32xf32>
    %32 = vector.shape_cast %31 : vector<1x8x8x32xf32> to vector<8x8x32xf32>
    %33 = vector.extract_strided_slice %21 {offsets = [8, 0], sizes = [8, 32], strides = [1, 1]} : vector<16x32xf32> to vector<8x32xf32>
    %34 = vector.shape_cast %33 : vector<8x32xf32> to vector<1x8x32xf32>
    %35 = vector.broadcast %34 : vector<1x8x32xf32> to vector<8x8x32xf32>
    %36 = arith.addf %32, %35 : vector<8x8x32xf32>
    %cst_11 = arith.constant 0.000000e+00 : f32
    %37 = vector.broadcast %cst_11 : f32 to vector<8x8x32xf32>
    %38 = arith.cmpf oge, %30, %37 : vector<8x8x32xf32>
    %39 = vector.broadcast %23 : vector<1x1x32xf32> to vector<8x8x32xf32>
    %40 = arith.mulf %39, %30 : vector<8x8x32xf32>
    %41 = arith.select %38, %30, %40 : vector<8x8x32xi1>, vector<8x8x32xf32>
    %cst_12 = arith.constant 0.000000e+00 : f32
    %42 = vector.broadcast %cst_12 : f32 to vector<8x8x32xf32>
    %43 = arith.cmpf oge, %36, %42 : vector<8x8x32xf32>
    %44 = vector.broadcast %23 : vector<1x1x32xf32> to vector<8x8x32xf32>
    %45 = arith.mulf %44, %36 : vector<8x8x32xf32>
    %46 = arith.select %43, %36, %45 : vector<8x8x32xi1>, vector<8x8x32xf32>
    %47 = tpu.concatenate %41, %46 in 0 : vector<8x8x32xf32>, vector<8x8x32xf32> -> vector<16x8x32xf32>
    %48 = vector.shape_cast %47 : vector<16x8x32xf32> to vector<128x32xf32>
    %c0_13 = arith.constant 0 : index
    %c0_14 = arith.constant 0 : index
    %49 = vector.load %arg5[%c0_13, %c0_14] : memref<64x64xbf16, #tpu.memory_space<vmem>>, vector<64x64xbf16>
    %c0_15 = arith.constant 0 : index
    %c0_16 = arith.constant 0 : index
    %50 = vector.load %arg6[%c0_15, %c0_16] : memref<32x32xbf16, #tpu.memory_space<vmem>>, vector<32x32xbf16>
    %c0_17 = arith.constant 0 : index
    %c0_18 = arith.constant 0 : index
    %51 = vector.load %arg7[%c0_17, %c0_18] : memref<2x32xf32, #tpu.memory_space<vmem>>, vector<2x32xf32>
    %52 = arith.truncf %48 : vector<128x32xf32> to vector<128x32xbf16>
    %53 = vector.extract_strided_slice %49 {offsets = [0, 0], sizes = [32, 64], strides = [1, 1]} : vector<64x64xbf16> to vector<32x64xbf16>
    %cst_19 = arith.constant dense<0.000000e+00> : vector<128x64xf32>
    %54 = tpu.matmul %52, %53, %cst_19 {dimension_numbers = #tpu.dot_dimension_numbers<[1], [0], [0], [1], [0, 0, 1, 1], [], []>} : vector<128x32xbf16>, vector<32x64xbf16>, vector<128x64xf32> -> vector<128x64xf32>
    %55 = vector.extract_strided_slice %49 {offsets = [32, 0], sizes = [32, 64], strides = [1, 1]} : vector<64x64xbf16> to vector<32x64xbf16>
    %cst_20 = arith.constant dense<0.000000e+00> : vector<128x64xf32>
    %56 = tpu.matmul %52, %55, %cst_20 {dimension_numbers = #tpu.dot_dimension_numbers<[1], [0], [0], [1], [0, 0, 1, 1], [], []>} : vector<128x32xbf16>, vector<32x64xbf16>, vector<128x64xf32> -> vector<128x64xf32>
    %c64_i32 = arith.constant 64 : i32
    %57 = tpu.dynamic_rotate %56 by %c64_i32 dim 0 : vector<128x64xf32>, i32 -> vector<128x64xf32>
    %58 = arith.addf %54, %57 : vector<128x64xf32>
    %59 = vector.extract_strided_slice %58 {offsets = [0, 0], sizes = [128, 32], strides = [1, 1]} : vector<128x64xf32> to vector<128x32xf32>
    %60 = vector.extract_strided_slice %58 {offsets = [0, 32], sizes = [128, 32], strides = [1, 1]} : vector<128x64xf32> to vector<128x32xf32>
    %61 = vector.shape_cast %59 : vector<128x32xf32> to vector<2x8x8x32xf32>
    %62 = vector.extract_strided_slice %61 {offsets = [0, 0, 0, 0], sizes = [1, 8, 8, 32], strides = [1, 1, 1, 1]} : vector<2x8x8x32xf32> to vector<1x8x8x32xf32>
    %63 = vector.shape_cast %62 : vector<1x8x8x32xf32> to vector<8x8x32xf32>
    %cst_21 = arith.constant dense<0xFF800000> : vector<8x32xf32>
    %64 = vector.multi_reduction <maximumf>, %63, %cst_21 [1] : vector<8x8x32xf32> to vector<8x32xf32>
    %65 = vector.extract_strided_slice %61 {offsets = [1, 0, 0, 0], sizes = [1, 8, 8, 32], strides = [1, 1, 1, 1]} : vector<2x8x8x32xf32> to vector<1x8x8x32xf32>
    %66 = vector.shape_cast %65 : vector<1x8x8x32xf32> to vector<8x8x32xf32>
    %cst_22 = arith.constant dense<0xFF800000> : vector<8x32xf32>
    %67 = vector.multi_reduction <maximumf>, %66, %cst_22 [0] : vector<8x8x32xf32> to vector<8x32xf32>
    %68 = tpu.concatenate %64, %67 in 0 : vector<8x32xf32>, vector<8x32xf32> -> vector<16x32xf32>
    %69 = arith.truncf %68 : vector<16x32xf32> to vector<16x32xbf16>
    %cst_23 = arith.constant dense<0.000000e+00> : vector<16x32xf32>
    %70 = tpu.matmul %69, %50, %cst_23 {dimension_numbers = #tpu.dot_dimension_numbers<[1], [0], [0], [1], [0, 0, 1, 1], [], []>} : vector<16x32xbf16>, vector<32x32xbf16>, vector<16x32xf32> -> vector<16x32xf32>
    %71 = vector.extract_strided_slice %51 {offsets = [0, 0], sizes = [1, 32], strides = [1, 1]} : vector<2x32xf32> to vector<1x32xf32>
    %72 = vector.broadcast %71 : vector<1x32xf32> to vector<16x32xf32>
    %73 = arith.addf %70, %72 : vector<16x32xf32>
    %74 = vector.extract_strided_slice %51 {offsets = [1, 0], sizes = [1, 32], strides = [1, 1]} : vector<2x32xf32> to vector<1x32xf32>
    %75 = vector.shape_cast %74 : vector<1x32xf32> to vector<1x1x32xf32>
    %76 = vector.shape_cast %60 : vector<128x32xf32> to vector<2x8x8x32xf32>
    %77 = vector.extract_strided_slice %76 {offsets = [0, 0, 0, 0], sizes = [1, 8, 8, 32], strides = [1, 1, 1, 1]} : vector<2x8x8x32xf32> to vector<1x8x8x32xf32>
    %78 = vector.shape_cast %77 : vector<1x8x8x32xf32> to vector<8x8x32xf32>
    %79 = vector.extract_strided_slice %73 {offsets = [0, 0], sizes = [8, 32], strides = [1, 1]} : vector<16x32xf32> to vector<8x32xf32>
    %80 = vector.shape_cast %79 : vector<8x32xf32> to vector<8x1x32xf32>
    %81 = vector.broadcast %80 : vector<8x1x32xf32> to vector<8x8x32xf32>
    %82 = arith.addf %78, %81 : vector<8x8x32xf32>
    %83 = vector.extract_strided_slice %76 {offsets = [1, 0, 0, 0], sizes = [1, 8, 8, 32], strides = [1, 1, 1, 1]} : vector<2x8x8x32xf32> to vector<1x8x8x32xf32>
    %84 = vector.shape_cast %83 : vector<1x8x8x32xf32> to vector<8x8x32xf32>
    %85 = vector.extract_strided_slice %73 {offsets = [8, 0], sizes = [8, 32], strides = [1, 1]} : vector<16x32xf32> to vector<8x32xf32>
    %86 = vector.shape_cast %85 : vector<8x32xf32> to vector<1x8x32xf32>
    %87 = vector.broadcast %86 : vector<1x8x32xf32> to vector<8x8x32xf32>
    %88 = arith.addf %84, %87 : vector<8x8x32xf32>
    %cst_24 = arith.constant 0.000000e+00 : f32
    %89 = vector.broadcast %cst_24 : f32 to vector<8x8x32xf32>
    %90 = arith.cmpf oge, %82, %89 : vector<8x8x32xf32>
    %91 = vector.broadcast %75 : vector<1x1x32xf32> to vector<8x8x32xf32>
    %92 = arith.mulf %91, %82 : vector<8x8x32xf32>
    %93 = arith.select %90, %82, %92 : vector<8x8x32xi1>, vector<8x8x32xf32>
    %cst_25 = arith.constant 0.000000e+00 : f32
    %94 = vector.broadcast %cst_25 : f32 to vector<8x8x32xf32>
    %95 = arith.cmpf oge, %88, %94 : vector<8x8x32xf32>
    %96 = vector.broadcast %75 : vector<1x1x32xf32> to vector<8x8x32xf32>
    %97 = arith.mulf %96, %88 : vector<8x8x32xf32>
    %98 = arith.select %95, %88, %97 : vector<8x8x32xi1>, vector<8x8x32xf32>
    %99 = tpu.concatenate %93, %98 in 0 : vector<8x8x32xf32>, vector<8x8x32xf32> -> vector<16x8x32xf32>
    %100 = vector.shape_cast %99 : vector<16x8x32xf32> to vector<128x32xf32>
    %c0_26 = arith.constant 0 : index
    %c0_27 = arith.constant 0 : index
    %101 = vector.load %arg8[%c0_26, %c0_27] : memref<64x32xbf16, #tpu.memory_space<vmem>>, vector<64x32xbf16>
    %c0_28 = arith.constant 0 : index
    %c0_29 = arith.constant 0 : index
    %102 = vector.load %arg9[%c0_28, %c0_29] : memref<16x16xbf16, #tpu.memory_space<vmem>>, vector<16x16xbf16>
    %c0_30 = arith.constant 0 : index
    %c0_31 = arith.constant 0 : index
    %103 = vector.load %arg10[%c0_30, %c0_31] : memref<2x16xf32, #tpu.memory_space<vmem>>, vector<2x16xf32>
    %104 = arith.truncf %100 : vector<128x32xf32> to vector<128x32xbf16>
    %105 = vector.extract_strided_slice %101 {offsets = [0, 0], sizes = [32, 32], strides = [1, 1]} : vector<64x32xbf16> to vector<32x32xbf16>
    %cst_32 = arith.constant dense<0.000000e+00> : vector<128x32xf32>
    %106 = tpu.matmul %104, %105, %cst_32 {dimension_numbers = #tpu.dot_dimension_numbers<[1], [0], [0], [1], [0, 0, 1, 1], [], []>} : vector<128x32xbf16>, vector<32x32xbf16>, vector<128x32xf32> -> vector<128x32xf32>
    %107 = vector.extract_strided_slice %101 {offsets = [32, 0], sizes = [32, 32], strides = [1, 1]} : vector<64x32xbf16> to vector<32x32xbf16>
    %cst_33 = arith.constant dense<0.000000e+00> : vector<128x32xf32>
    %108 = tpu.matmul %104, %107, %cst_33 {dimension_numbers = #tpu.dot_dimension_numbers<[1], [0], [0], [1], [0, 0, 1, 1], [], []>} : vector<128x32xbf16>, vector<32x32xbf16>, vector<128x32xf32> -> vector<128x32xf32>
    %c64_i32_34 = arith.constant 64 : i32
    %109 = tpu.dynamic_rotate %108 by %c64_i32_34 dim 0 : vector<128x32xf32>, i32 -> vector<128x32xf32>
    %110 = arith.addf %106, %109 : vector<128x32xf32>
    %111 = vector.extract_strided_slice %110 {offsets = [0, 0], sizes = [128, 16], strides = [1, 1]} : vector<128x32xf32> to vector<128x16xf32>
    %112 = vector.extract_strided_slice %110 {offsets = [0, 16], sizes = [128, 16], strides = [1, 1]} : vector<128x32xf32> to vector<128x16xf32>
    %113 = vector.shape_cast %111 : vector<128x16xf32> to vector<2x8x8x16xf32>
    %114 = vector.extract_strided_slice %113 {offsets = [0, 0, 0, 0], sizes = [1, 8, 8, 16], strides = [1, 1, 1, 1]} : vector<2x8x8x16xf32> to vector<1x8x8x16xf32>
    %115 = vector.shape_cast %114 : vector<1x8x8x16xf32> to vector<8x8x16xf32>
    %cst_35 = arith.constant dense<0xFF800000> : vector<8x16xf32>
    %116 = vector.multi_reduction <maximumf>, %115, %cst_35 [1] : vector<8x8x16xf32> to vector<8x16xf32>
    %117 = vector.extract_strided_slice %113 {offsets = [1, 0, 0, 0], sizes = [1, 8, 8, 16], strides = [1, 1, 1, 1]} : vector<2x8x8x16xf32> to vector<1x8x8x16xf32>
    %118 = vector.shape_cast %117 : vector<1x8x8x16xf32> to vector<8x8x16xf32>
    %cst_36 = arith.constant dense<0xFF800000> : vector<8x16xf32>
    %119 = vector.multi_reduction <maximumf>, %118, %cst_36 [0] : vector<8x8x16xf32> to vector<8x16xf32>
    %120 = tpu.concatenate %116, %119 in 0 : vector<8x16xf32>, vector<8x16xf32> -> vector<16x16xf32>
    %121 = arith.truncf %120 : vector<16x16xf32> to vector<16x16xbf16>
    %cst_37 = arith.constant dense<0.000000e+00> : vector<16x16xf32>
    %122 = tpu.matmul %121, %102, %cst_37 {dimension_numbers = #tpu.dot_dimension_numbers<[1], [0], [0], [1], [0, 0, 1, 1], [], []>} : vector<16x16xbf16>, vector<16x16xbf16>, vector<16x16xf32> -> vector<16x16xf32>
    %123 = vector.extract_strided_slice %103 {offsets = [0, 0], sizes = [1, 16], strides = [1, 1]} : vector<2x16xf32> to vector<1x16xf32>
    %124 = vector.broadcast %123 : vector<1x16xf32> to vector<16x16xf32>
    %125 = arith.addf %122, %124 : vector<16x16xf32>
    %126 = vector.extract_strided_slice %103 {offsets = [1, 0], sizes = [1, 16], strides = [1, 1]} : vector<2x16xf32> to vector<1x16xf32>
    %127 = vector.shape_cast %126 : vector<1x16xf32> to vector<1x1x16xf32>
    %128 = vector.shape_cast %112 : vector<128x16xf32> to vector<2x8x8x16xf32>
    %129 = vector.extract_strided_slice %128 {offsets = [0, 0, 0, 0], sizes = [1, 8, 8, 16], strides = [1, 1, 1, 1]} : vector<2x8x8x16xf32> to vector<1x8x8x16xf32>
    %130 = vector.shape_cast %129 : vector<1x8x8x16xf32> to vector<8x8x16xf32>
    %131 = vector.extract_strided_slice %125 {offsets = [0, 0], sizes = [8, 16], strides = [1, 1]} : vector<16x16xf32> to vector<8x16xf32>
    %132 = vector.shape_cast %131 : vector<8x16xf32> to vector<8x1x16xf32>
    %133 = vector.broadcast %132 : vector<8x1x16xf32> to vector<8x8x16xf32>
    %134 = arith.addf %130, %133 : vector<8x8x16xf32>
    %135 = vector.extract_strided_slice %128 {offsets = [1, 0, 0, 0], sizes = [1, 8, 8, 16], strides = [1, 1, 1, 1]} : vector<2x8x8x16xf32> to vector<1x8x8x16xf32>
    %136 = vector.shape_cast %135 : vector<1x8x8x16xf32> to vector<8x8x16xf32>
    %137 = vector.extract_strided_slice %125 {offsets = [8, 0], sizes = [8, 16], strides = [1, 1]} : vector<16x16xf32> to vector<8x16xf32>
    %138 = vector.shape_cast %137 : vector<8x16xf32> to vector<1x8x16xf32>
    %139 = vector.broadcast %138 : vector<1x8x16xf32> to vector<8x8x16xf32>
    %140 = arith.addf %136, %139 : vector<8x8x16xf32>
    %cst_38 = arith.constant 0.000000e+00 : f32
    %141 = vector.broadcast %cst_38 : f32 to vector<8x8x16xf32>
    %142 = arith.cmpf oge, %134, %141 : vector<8x8x16xf32>
    %143 = vector.broadcast %127 : vector<1x1x16xf32> to vector<8x8x16xf32>
    %144 = arith.mulf %143, %134 : vector<8x8x16xf32>
    %145 = arith.select %142, %134, %144 : vector<8x8x16xi1>, vector<8x8x16xf32>
    %cst_39 = arith.constant 0.000000e+00 : f32
    %146 = vector.broadcast %cst_39 : f32 to vector<8x8x16xf32>
    %147 = arith.cmpf oge, %140, %146 : vector<8x8x16xf32>
    %148 = vector.broadcast %127 : vector<1x1x16xf32> to vector<8x8x16xf32>
    %149 = arith.mulf %148, %140 : vector<8x8x16xf32>
    %150 = arith.select %147, %140, %149 : vector<8x8x16xi1>, vector<8x8x16xf32>
    %151 = tpu.concatenate %145, %150 in 0 : vector<8x8x16xf32>, vector<8x8x16xf32> -> vector<16x8x16xf32>
    %152 = vector.shape_cast %151 : vector<16x8x16xf32> to vector<128x16xf32>
    %153 = vector.shape_cast %152 : vector<128x16xf32> to vector<2x8x128xf32>
    %c0_40 = arith.constant 0 : index
    %c0_41 = arith.constant 0 : index
    %c0_42 = arith.constant 0 : index
    %c0_43 = arith.constant 0 : index
    %154 = vector.load %arg11[%c0_40, %c0_41, %c0_42, %c0_43] : memref<1x2x8x128xf32, #tpu.memory_space<vmem>>, vector<1x2x8x128xf32>
    %155 = vector.shape_cast %154 : vector<1x2x8x128xf32> to vector<2x8x128xf32>
    %156 = vector.shape_cast %153 : vector<2x8x128xf32> to vector<1x2x8x128xf32>
    tpu.vector_store %arg11[%c0_40, %c0_41, %c0_42, %c0_43], %156 {strides = array<i32>} : memref<1x2x8x128xf32, #tpu.memory_space<vmem>>, vector<1x2x8x128xf32>,
    return
  }
  func.func @transform_0(%arg0: i32) -> (i32, i32, i32) {
    %c0_i32 = arith.constant 0 : i32
    %c0_i32_0 = arith.constant 0 : i32
    %c0_i32_1 = arith.constant 0 : i32
    return %arg0, %c0_i32, %c0_i32_0 : i32, i32, i32
  }
  func.func @transform_1(%arg0: i32) -> (i32, i32) {
    %c0_i32 = arith.constant 0 : i32
    %c0_i32_0 = arith.constant 0 : i32
    %c0_i32_1 = arith.constant 0 : i32
    return %c0_i32, %c0_i32_0 : i32, i32
  }
  func.func @transform_2(%arg0: i32) -> (i32, i32) {
    %c0_i32 = arith.constant 0 : i32
    %c0_i32_0 = arith.constant 0 : i32
    %c0_i32_1 = arith.constant 0 : i32
    return %c0_i32, %c0_i32_0 : i32, i32
  }
  func.func @transform_3(%arg0: i32) -> (i32, i32) {
    %c0_i32 = arith.constant 0 : i32
    %c0_i32_0 = arith.constant 0 : i32
    %c0_i32_1 = arith.constant 0 : i32
    return %c0_i32, %c0_i32_0 : i32, i32
  }
  func.func @transform_4(%arg0: i32) -> (i32, i32) {
    %c0_i32 = arith.constant 0 : i32
    %c0_i32_0 = arith.constant 0 : i32
    %c0_i32_1 = arith.constant 0 : i32
    return %c0_i32, %c0_i32_0 : i32, i32
  }
  func.func @transform_5(%arg0: i32) -> (i32, i32) {
    %c0_i32 = arith.constant 0 : i32
    %c0_i32_0 = arith.constant 0 : i32
    %c0_i32_1 = arith.constant 0 : i32
    return %c0_i32, %c0_i32_0 : i32, i32
  }
  func.func @transform_6(%arg0: i32) -> (i32, i32) {
    %c0_i32 = arith.constant 0 : i32
    %c0_i32_0 = arith.constant 0 : i32
    %c0_i32_1 = arith.constant 0 : i32
    return %c0_i32, %c0_i32_0 : i32, i32
  }
  func.func @transform_7(%arg0: i32) -> (i32, i32) {
    %c0_i32 = arith.constant 0 : i32
    %c0_i32_0 = arith.constant 0 : i32
    %c0_i32_1 = arith.constant 0 : i32
    return %c0_i32, %c0_i32_0 : i32, i32
  }
  func.func @transform_8(%arg0: i32) -> (i32, i32) {
    %c0_i32 = arith.constant 0 : i32
    %c0_i32_0 = arith.constant 0 : i32
    %c0_i32_1 = arith.constant 0 : i32
    return %c0_i32, %c0_i32_0 : i32, i32
  }
  func.func @transform_9(%arg0: i32) -> (i32, i32) {
    %c0_i32 = arith.constant 0 : i32
    %c0_i32_0 = arith.constant 0 : i32
    %c0_i32_1 = arith.constant 0 : i32
    return %c0_i32, %c0_i32_0 : i32, i32
  }
  func.func @transform_10(%arg0: i32) -> (i32, i32, i32, i32) {
    %c0_i32 = arith.constant 0 : i32
    %c0_i32_0 = arith.constant 0 : i32
    %c0_i32_1 = arith.constant 0 : i32
    %c0_i32_2 = arith.constant 0 : i32
    return %arg0, %c0_i32, %c0_i32_0, %c0_i32_1 : i32, i32, i32, i32
  }
}

</mosaic_0001>

<llo_original>
// kernel: tpu_custom_call.1
$region0: #{tpu_custom_call.1}
  #allocation0 [shape = 'u32[]', space=smem, size = 0x4, offset = 0x4, fixed_abs, tag = 'smem constant byte address 0x4 - core index']
  #allocation1 [shape = 'u32[144,128]{1,0:T(1,128)}', space=vmem, size = 0x12000, scoped, tag = 'internal scratch']
  %s0 = inlined_call_operand.vmem [shape: f32[2,128,4], index: 0, kind: input, shape index: {}]
  %s1 = inlined_call_operand.vmem [shape: bf16[4,64], index: 1, kind: input, shape index: {}]
  %s2 = inlined_call_operand.vmem [shape: bf16[32,32], index: 2, kind: input, shape index: {}]
  %s3 = inlined_call_operand.vmem [shape: f32[2,32], index: 3, kind: input, shape index: {}]
  %s4 = inlined_call_operand.vmem [shape: bf16[64,64], index: 4, kind: input, shape index: {}]
  %s5 = inlined_call_operand.vmem [shape: bf16[32,32], index: 5, kind: input, shape index: {}]
  %s6 = inlined_call_operand.vmem [shape: f32[2,32], index: 6, kind: input, shape index: {}]
  %s7 = inlined_call_operand.vmem [shape: bf16[64,32], index: 7, kind: input, shape index: {}]
  %s8 = inlined_call_operand.vmem [shape: bf16[16,16], index: 8, kind: input, shape index: {}]
  %s9 = inlined_call_operand.vmem [shape: f32[2,16], index: 9, kind: input, shape index: {}]
  %s10 = inlined_call_operand.hbm [shape: f32[2,2,8,128], index: 10, kind: output, shape index: {}]
  %s11 = sld [smem:[#allocation0]]
  $region73: #{tpu_custom_call.1} parent=0
    _
  %s13 = ssub.s32 1, %s11
  %s14 = scalar_select 0, %s13, %s11
  $region1: #{tpu_custom_call.1} parent=0
    #allocation2 [shape = 'u8[16384]{0}', space=vmem, size = 0x4000, scoped, tag = 'output window, operand 0']
    #allocation3 [shape = 's32[2]{0}', space=sflag, size = 0x8, scoped, tag = 'scoped memory for tpu_custom_call.1']
    %15 = vsyncpa [#allocation3], 0
    %s16 = scalar_lea.sflag [#allocation3], 1
    %17 = vsyncpa %s16, 0
    loop: start=0, step=1, limit=4
    $region2: #{tpu_custom_call.1} parent=1 // loop_pre_header
      _
    $region3: #{tpu_custom_call.1} parent=1 // loop_header
      %s19 = sphi 0, %s23
      %p20 = scmp.ge.s32.totalorder %s19, 4
      %s29 = sphi 0, %s31
      %s32 = sphi 0, %s29
      %s33 = sphi 0, %s32
      %s49 = sphi 0, %s33
      %s53 = sphi 0, %s53
      %s55 = sphi 0, %s53
      %s56 = sphi 0, %s55
      %s70 = sphi 0, %s56
      %s74 = sphi 0, %s74
      %s76 = sphi 0, %s74
      %s77 = sphi 0, %s76
      %s91 = sphi 0, %s77
      %s95 = sphi 0, %s95
      %s97 = sphi 0, %s95
      %s98 = sphi 0, %s97
      %s112 = sphi 0, %s98
      %s116 = sphi 0, %s116
      %s118 = sphi 0, %s116
      %s119 = sphi 0, %s118
      %s133 = sphi 0, %s119
      %s137 = sphi 0, %s137
      %s139 = sphi 0, %s137
      %s140 = sphi 0, %s139
      %s154 = sphi 0, %s140
      %s158 = sphi 0, %s158
      %s160 = sphi 0, %s158
      %s161 = sphi 0, %s160
      %s175 = sphi 0, %s161
      %s179 = sphi 0, %s179
      %s181 = sphi 0, %s179
      %s182 = sphi 0, %s181
      %s196 = sphi 0, %s182
      %s200 = sphi 0, %s200
      %s202 = sphi 0, %s200
      %s203 = sphi 0, %s202
      %s217 = sphi 0, %s203
      %s221 = sphi 0, %s221
      %s223 = sphi 0, %s221
      %s224 = sphi 0, %s223
      %s238 = sphi 0, %s224
      %s244 = sphi 0, %s246
      %s247 = sphi 0, %s244
      %s248 = sphi 0, %s247
      %s264 = sphi 0, %s248
    $region4: #{tpu_custom_call.1} parent=1 // loop_header_branch
      %22 = sbr.rel (%p20) target = $region8
    $region5: #{tpu_custom_call.1} parent=1 // loop_body
      %s24 = ssub.s32 %s19, 1
      %s25 = ssub.s32 %s19, 2
      %s26 = sadd.s32 %s19, 1
      %s27 = ssub.s32 %s19, %s26
      %p28 = scmp.eq.s32.totalorder %s27, 0
      %s30 = sadd.s32 %s29, 1
      %s31 = scalar_select %p28, %s29, %s30
      %p34 = pneg %p28
      %p35 = scmp.eq.s32.totalorder %s19, 1
      %p36 = por %p34, %p35
      %p37 = scmp.ne.s32.totalorder %s29, %s32
      %p38 = scmp.eq.s32.totalorder %s19, 0
      %p39 = por %p37, %p38
      %p40 = scmp.ne.s32.totalorder %s29, %s32
      %p41 = scmp.eq.s32.totalorder %s24, 1
      %p42 = por %p40, %p41
      %p43 = scmp.ne.s32.totalorder %s32, %s33
      %p44 = scmp.eq.s32.totalorder %s24, 0
      %p45 = por %p43, %p44
      %p46 = scmp.ne.s32.totalorder %s32, %s33
      %p47 = scmp.eq.s32.totalorder %s25, 1
      %p48 = por %p46, %p47
      %p50 = scmp.ne.s32.totalorder %s33, %s49
      %p51 = scmp.eq.s32.totalorder %s25, 0
      %p52 = por %p50, %p51
      %s54 = sadd.s32 %s53, 1
      %p57 = scmp.eq.s32.totalorder %s19, 1
      %p58 = scmp.ne.s32.totalorder %s53, %s55
      %p59 = scmp.eq.s32.totalorder %s19, 0
      %p60 = por %p58, %p59
      %p61 = scmp.ne.s32.totalorder %s53, %s55
      %p62 = scmp.eq.s32.totalorder %s24, 1
      %p63 = por %p61, %p62
      %p64 = scmp.ne.s32.totalorder %s55, %s56
      %p65 = scmp.eq.s32.totalorder %s24, 0
      %p66 = por %p64, %p65
      %p67 = scmp.ne.s32.totalorder %s55, %s56
      %p68 = scmp.eq.s32.totalorder %s25, 1
      %p69 = por %p67, %p68
      %p71 = scmp.ne.s32.totalorder %s56, %s70
      %p72 = scmp.eq.s32.totalorder %s25, 0
      %p73 = por %p71, %p72
      %s75 = sadd.s32 %s74, 1
      %p78 = scmp.eq.s32.totalorder %s19, 1
      %p79 = scmp.ne.s32.totalorder %s74, %s76
      %p80 = scmp.eq.s32.totalorder %s19, 0
      %p81 = por %p79, %p80
      %p82 = scmp.ne.s32.totalorder %s74, %s76
      %p83 = scmp.eq.s32.totalorder %s24, 1
      %p84 = por %p82, %p83
      %p85 = scmp.ne.s32.totalorder %s76, %s77
      %p86 = scmp.eq.s32.totalorder %s24, 0
      %p87 = por %p85, %p86
      %p88 = scmp.ne.s32.totalorder %s76, %s77
      %p89 = scmp.eq.s32.totalorder %s25, 1
      %p90 = por %p88, %p89
      %p92 = scmp.ne.s32.totalorder %s77, %s91
      %p93 = scmp.eq.s32.totalorder %s25, 0
      %p94 = por %p92, %p93
      %s96 = sadd.s32 %s95, 1
      %p99 = scmp.eq.s32.totalorder %s19, 1
      %p100 = scmp.ne.s32.totalorder %s95, %s97
      %p101 = scmp.eq.s32.totalorder %s19, 0
      %p102 = por %p100, %p101
      %p103 = scmp.ne.s32.totalorder %s95, %s97
      %p104 = scmp.eq.s32.totalorder %s24, 1
      %p105 = por %p103, %p104
      %p106 = scmp.ne.s32.totalorder %s97, %s98
      %p107 = scmp.eq.s32.totalorder %s24, 0
      %p108 = por %p106, %p107
      %p109 = scmp.ne.s32.totalorder %s97, %s98
      %p110 = scmp.eq.s32.totalorder %s25, 1
      %p111 = por %p109, %p110
      %p113 = scmp.ne.s32.totalorder %s98, %s112
      %p114 = scmp.eq.s32.totalorder %s25, 0
      %p115 = por %p113, %p114
      %s117 = sadd.s32 %s116, 1
      %p120 = scmp.eq.s32.totalorder %s19, 1
      %p121 = scmp.ne.s32.totalorder %s116, %s118
      %p122 = scmp.eq.s32.totalorder %s19, 0
      %p123 = por %p121, %p122
      %p124 = scmp.ne.s32.totalorder %s116, %s118
      %p125 = scmp.eq.s32.totalorder %s24, 1
      %p126 = por %p124, %p125
      %p127 = scmp.ne.s32.totalorder %s118, %s119
      %p128 = scmp.eq.s32.totalorder %s24, 0
      %p129 = por %p127, %p128
      %p130 = scmp.ne.s32.totalorder %s118, %s119
      %p131 = scmp.eq.s32.totalorder %s25, 1
      %p132 = por %p130, %p131
      %p134 = scmp.ne.s32.totalorder %s119, %s133
      %p135 = scmp.eq.s32.totalorder %s25, 0
      %p136 = por %p134, %p135
      %s138 = sadd.s32 %s137, 1
      %p141 = scmp.eq.s32.totalorder %s19, 1
      %p142 = scmp.ne.s32.totalorder %s137, %s139
      %p143 = scmp.eq.s32.totalorder %s19, 0
      %p144 = por %p142, %p143
      %p145 = scmp.ne.s32.totalorder %s137, %s139
      %p146 = scmp.eq.s32.totalorder %s24, 1
      %p147 = por %p145, %p146
      %p148 = scmp.ne.s32.totalorder %s139, %s140
      %p149 = scmp.eq.s32.totalorder %s24, 0
      %p150 = por %p148, %p149
      %p151 = scmp.ne.s32.totalorder %s139, %s140
      %p152 = scmp.eq.s32.totalorder %s25, 1
      %p153 = por %p151, %p152
      %p155 = scmp.ne.s32.totalorder %s140, %s154
      %p156 = scmp.eq.s32.totalorder %s25, 0
      %p157 = por %p155, %p156
      %s159 = sadd.s32 %s158, 1
      %p162 = scmp.eq.s32.totalorder %s19, 1
      %p163 = scmp.ne.s32.totalorder %s158, %s160
      %p164 = scmp.eq.s32.totalorder %s19, 0
      %p165 = por %p163, %p164
      %p166 = scmp.ne.s32.totalorder %s158, %s160
      %p167 = scmp.eq.s32.totalorder %s24, 1
      %p168 = por %p166, %p167
      %p169 = scmp.ne.s32.totalorder %s160, %s161
      %p170 = scmp.eq.s32.totalorder %s24, 0
      %p171 = por %p169, %p170
      %p172 = scmp.ne.s32.totalorder %s160, %s161
      %p173 = scmp.eq.s32.totalorder %s25, 1
      %p174 = por %p172, %p173
      %p176 = scmp.ne.s32.totalorder %s161, %s175
      %p177 = scmp.eq.s32.totalorder %s25, 0
      %p178 = por %p176, %p177
      %s180 = sadd.s32 %s179, 1
      %p183 = scmp.eq.s32.totalorder %s19, 1
      %p184 = scmp.ne.s32.totalorder %s179, %s181
      %p185 = scmp.eq.s32.totalorder %s19, 0
      %p186 = por %p184, %p185
      %p187 = scmp.ne.s32.totalorder %s179, %s181
      %p188 = scmp.eq.s32.totalorder %s24, 1
      %p189 = por %p187, %p188
      %p190 = scmp.ne.s32.totalorder %s181, %s182
      %p191 = scmp.eq.s32.totalorder %s24, 0
      %p192 = por %p190, %p191
      %p193 = scmp.ne.s32.totalorder %s181, %s182
      %p194 = scmp.eq.s32.totalorder %s25, 1
      %p195 = por %p193, %p194
      %p197 = scmp.ne.s32.totalorder %s182, %s196
      %p198 = scmp.eq.s32.totalorder %s25, 0
      %p199 = por %p197, %p198
      %s201 = sadd.s32 %s200, 1
      %p204 = scmp.eq.s32.totalorder %s19, 1
      %p205 = scmp.ne.s32.totalorder %s200, %s202
      %p206 = scmp.eq.s32.totalorder %s19, 0
      %p207 = por %p205, %p206
      %p208 = scmp.ne.s32.totalorder %s200, %s202
      %p209 = scmp.eq.s32.totalorder %s24, 1
      %p210 = por %p208, %p209
      %p211 = scmp.ne.s32.totalorder %s202, %s203
      %p212 = scmp.eq.s32.totalorder %s24, 0
      %p213 = por %p211, %p212
      %p214 = scmp.ne.s32.totalorder %s202, %s203
      %p215 = scmp.eq.s32.totalorder %s25, 1
      %p216 = por %p214, %p215
      %p218 = scmp.ne.s32.totalorder %s203, %s217
      %p219 = scmp.eq.s32.totalorder %s25, 0
      %p220 = por %p218, %p219
      %s222 = sadd.s32 %s221, 1
      %p225 = scmp.eq.s32.totalorder %s19, 1
      %p226 = scmp.ne.s32.totalorder %s221, %s223
      %p227 = scmp.eq.s32.totalorder %s19, 0
      %p228 = por %p226, %p227
      %p229 = scmp.ne.s32.totalorder %s221, %s223
      %p230 = scmp.eq.s32.totalorder %s24, 1
      %p231 = por %p229, %p230
      %p232 = scmp.ne.s32.totalorder %s223, %s224
      %p233 = scmp.eq.s32.totalorder %s24, 0
      %p234 = por %p232, %p233
      %p235 = scmp.ne.s32.totalorder %s223, %s224
      %p236 = scmp.eq.s32.totalorder %s25, 1
      %p237 = por %p235, %p236
      %p239 = scmp.ne.s32.totalorder %s224, %s238
      %p240 = scmp.eq.s32.totalorder %s25, 0
      %p241 = por %p239, %p240
      %s242 = ssub.s32 %s19, %s26
      %p243 = scmp.eq.s32.totalorder %s242, 0
      %s245 = sadd.s32 %s244, 1
      %s246 = scalar_select %p243, %s244, %s245
      %p249 = pneg %p243
      %p250 = scmp.eq.s32.totalorder %s19, 1
      %p251 = por %p249, %p250
      %p252 = scmp.ne.s32.totalorder %s244, %s247
      %p253 = scmp.eq.s32.totalorder %s19, 0
      %p254 = por %p252, %p253
      %p255 = scmp.ne.s32.totalorder %s244, %s247
      %p256 = scmp.eq.s32.totalorder %s24, 1
      %p257 = por %p255, %p256
      %p258 = scmp.ne.s32.totalorder %s247, %s248
      %p259 = scmp.eq.s32.totalorder %s24, 0
      %p260 = por %p258, %p259
      %p261 = scmp.ne.s32.totalorder %s247, %s248
      %p262 = scmp.eq.s32.totalorder %s25, 1
      %p263 = por %p261, %p262
      %p265 = scmp.ne.s32.totalorder %s248, %s264
      %p266 = scmp.eq.s32.totalorder %s25, 0
      %p267 = por %p265, %p266
      %p268 = scmp.le.s32.totalorder 1, %s19
      %p269 = scmp.lt.s32.totalorder %s19, 3
      %p270 = pnand %p268, %p269
      %p271 = pneg %p270
      // Predicated region
      $region9: #{tpu_custom_call.1} parent=5 // pred_check
        _
      $region10: #{tpu_custom_call.1} parent=5 // pred_check_branch
        %273 = sbr.rel (%p270) target = $region12
      $region11: #{tpu_custom_call.1} parent=5 // pred_region
        %s274 = ssub.s32 %s19, 1
        // Predicated region
        $region13: #{tpu_custom_call.1} parent=11 // pred_check
          %p275 = pneg %p66
        $region14: #{tpu_custom_call.1} parent=11 // pred_check_branch
          %277 = sbr.rel (%p275) target = $region16
        $region15: #{tpu_custom_call.1} parent=11 // pred_region
          _
        $region16: #{tpu_custom_call.1} parent=11 // pred_fallthru
          _
        // Predicated region
        $region17: #{tpu_custom_call.1} parent=11 // pred_check
          %p278 = pneg %p87
        $region18: #{tpu_custom_call.1} parent=11 // pred_check_branch
          %280 = sbr.rel (%p278) target = $region20
        $region19: #{tpu_custom_call.1} parent=11 // pred_region
          _
        $region20: #{tpu_custom_call.1} parent=11 // pred_fallthru
          _
        // Predicated region
        $region21: #{tpu_custom_call.1} parent=11 // pred_check
          %p281 = pneg %p108
        $region22: #{tpu_custom_call.1} parent=11 // pred_check_branch
          %283 = sbr.rel (%p281) target = $region24
        $region23: #{tpu_custom_call.1} parent=11 // pred_region
          _
        $region24: #{tpu_custom_call.1} parent=11 // pred_fallthru
          _
        // Predicated region
        $region25: #{tpu_custom_call.1} parent=11 // pred_check
          %p284 = pneg %p129
        $region26: #{tpu_custom_call.1} parent=11 // pred_check_branch
          %286 = sbr.rel (%p284) target = $region28
        $region27: #{tpu_custom_call.1} parent=11 // pred_region
          _
        $region28: #{tpu_custom_call.1} parent=11 // pred_fallthru
          _
        // Predicated region
        $region29: #{tpu_custom_call.1} parent=11 // pred_check
          %p287 = pneg %p150
        $region30: #{tpu_custom_call.1} parent=11 // pred_check_branch
          %289 = sbr.rel (%p287) target = $region32
        $region31: #{tpu_custom_call.1} parent=11 // pred_region
          _
        $region32: #{tpu_custom_call.1} parent=11 // pred_fallthru
          _
        // Predicated region
        $region33: #{tpu_custom_call.1} parent=11 // pred_check
          %p290 = pneg %p171
        $region34: #{tpu_custom_call.1} parent=11 // pred_check_branch
          %292 = sbr.rel (%p290) target = $region36
        $region35: #{tpu_custom_call.1} parent=11 // pred_region
          _
        $region36: #{tpu_custom_call.1} parent=11 // pred_fallthru
          _
        // Predicated region
        $region37: #{tpu_custom_call.1} parent=11 // pred_check
          %p293 = pneg %p192
        $region38: #{tpu_custom_call.1} parent=11 // pred_check_branch
          %295 = sbr.rel (%p293) target = $region40
        $region39: #{tpu_custom_call.1} parent=11 // pred_region
          _
        $region40: #{tpu_custom_call.1} parent=11 // pred_fallthru
          _
        // Predicated region
        $region41: #{tpu_custom_call.1} parent=11 // pred_check
          %p296 = pneg %p213
        $region42: #{tpu_custom_call.1} parent=11 // pred_check_branch
          %298 = sbr.rel (%p296) target = $region44
        $region43: #{tpu_custom_call.1} parent=11 // pred_region
          _
        $region44: #{tpu_custom_call.1} parent=11 // pred_fallthru
          _
        // Predicated region
        $region45: #{tpu_custom_call.1} parent=11 // pred_check
          %p299 = pneg %p234
        $region46: #{tpu_custom_call.1} parent=11 // pred_check_branch
          %301 = sbr.rel (%p299) target = $region48
        $region47: #{tpu_custom_call.1} parent=11 // pred_region
          _
        $region48: #{tpu_custom_call.1} parent=11 // pred_fallthru
          _
      $region12: #{tpu_custom_call.1} parent=5 // pred_fallthru
        _
      %p302 = scmp.lt.s32.totalorder %s19, 2
      // Predicated region
      $region49: #{tpu_custom_call.1} parent=5 // pred_check
        %p303 = pneg %p302
      $region50: #{tpu_custom_call.1} parent=5 // pred_check_branch
        %305 = sbr.rel (%p303) target = $region52
      $region51: #{tpu_custom_call.1} parent=5 // pred_region
        // Predicated region
        $region53: #{tpu_custom_call.1} parent=51 // pred_check
          %p306 = pneg %p39
        $region54: #{tpu_custom_call.1} parent=51 // pred_check_branch
          %308 = sbr.rel (%p306) target = $region56
        $region55: #{tpu_custom_call.1} parent=51 // pred_region
          %p309 = scmp.lt.s32.totalorder %s19, 1
          %s310 = scalar_select %p309, %s19, 1
          %s311 = smul.addr %s310, 16
          %s312 = smul.addr %s311, 8
          %s313 = scalar_lea.vmem %s0, %s312
        $region56: #{tpu_custom_call.1} parent=51 // pred_fallthru
          _
      $region52: #{tpu_custom_call.1} parent=5 // pred_fallthru
        _
      %p314 = scmp.le.s32.totalorder 1, %s19
      %p315 = scmp.lt.s32.totalorder %s19, 3
      %p316 = pnand %p314, %p315
      %p317 = pneg %p316
      // Predicated region
      $region57: #{tpu_custom_call.1} parent=5 // pred_check
        _
      $region58: #{tpu_custom_call.1} parent=5 // pred_check_branch
        %319 = sbr.rel (%p316) target = $region60
      $region59: #{tpu_custom_call.1} parent=5 // pred_region
        %s320 = ssub.s32 %s19, 1
        %p321 = scmp.lt.s32.totalorder %s24, 1
        %s322 = scalar_select %p321, %s24, 1
        %s323 = smul.addr %s322, 16
        %s324 = smul.addr %s323, 8
        %s325 = scalar_lea.vmem %s0, %s324
        %p326 = pneg %p45
        %p327 = pneg %p42
        %p328 = pneg %p66
        %p329 = pneg %p63
        %p330 = pneg %p87
        %p331 = pneg %p84
        %p332 = pneg %p108
        %p333 = pneg %p105
        %p334 = pneg %p129
        %p335 = pneg %p126
        %p336 = pneg %p150
        %p337 = pneg %p147
        %p338 = pneg %p171
        %p339 = pneg %p168
        %p340 = pneg %p192
        %p341 = pneg %p189
        %p342 = pneg %p213
        %p343 = pneg %p210
        %p344 = pneg %p234
        %p345 = pneg %p231
        %p346 = pneg %p260
        %p347 = pneg %p257
        %s348 = sand.u32 %s247, 1
        %s349 = scalar_lea.sflag [#allocation3], %s348
        %s350 = sand.u32 %s247, 1
        %s351 = smul.addr %s350, 16
        %s352 = scalar_lea.vmem [#allocation2], %s351
        %p353 = scmp.lt.s32.totalorder %s24, 1
        %s354 = scalar_select %p353, %s24, 1
        %s355 = smul.addr %s354, 16
        %s356 = smul.addr %s355, 8
        %s357 = scalar_lea.vmem %s0, %s356
        %v359 = vld [vmem:[%s357] sm:$0xff]
        %v360 = vld [vmem:[%s357 + $0x8] sm:$0xff]
        %v361 = vld [vmem:[%s357 + $0x10] sm:$0xff]
        %v362 = vld [vmem:[%s357 + $0x18] sm:$0xff]
        %v363 = vld [vmem:[%s357 + $0x20] sm:$0xff]
        %v364 = vld [vmem:[%s357 + $0x28] sm:$0xff]
        %v365 = vld [vmem:[%s357 + $0x30] sm:$0xff]
        %v366 = vld [vmem:[%s357 + $0x38] sm:$0xff]
        %v367 = vld [vmem:[%s357 + $0x40] sm:$0xff]
        %v368 = vld [vmem:[%s357 + $0x48] sm:$0xff]
        %v369 = vld [vmem:[%s357 + $0x50] sm:$0xff]
        %v370 = vld [vmem:[%s357 + $0x58] sm:$0xff]
        %v371 = vld [vmem:[%s357 + $0x60] sm:$0xff]
        %v372 = vld [vmem:[%s357 + $0x68] sm:$0xff]
        %v373 = vld [vmem:[%s357 + $0x70] sm:$0xff]
        %v374 = vld [vmem:[%s357 + $0x78] sm:$0xff]
        %v375 = vld [vmem:[%s1] sm:$0x3]
        %v376 = vld [vmem:[%s2] sm:$0xf]
        %v377 = vld [vmem:[%s2 + $0x4] sm:$0xf]
        %v378 = vld [vmem:[%s2 + $0x8] sm:$0xf]
        %v379 = vld [vmem:[%s2 + $0xc] sm:$0xf]
        %v380 = vld [vmem:[%s3] sm:$0x3]
        %v381 = vpack.c.bf16 %v360, %v359
        %v382 = vpack.c.bf16 %v362, %v361
        %v383 = vpack.c.bf16 %v364, %v363
        %v384 = vpack.c.bf16 %v366, %v365
        %v385 = vpack.c.bf16 %v368, %v367
        %v386 = vpack.c.bf16 %v370, %v369
        %v387 = vpack.c.bf16 %v372, %v371
        %v388 = vpack.c.bf16 %v374, %v373
        %vm389 = vcmask 31744
        %v391 = vsel %vm389, %v381, 0
        %v394 = vsel %vm389, %v382, 0
        %v397 = vsel %vm389, %v383, 0
        %v400 = vsel %vm389, %v384, 0
        %v403 = vsel %vm389, %v385, 0
        %v406 = vsel %vm389, %v386, 0
        %v409 = vsel %vm389, %v387, 0
        %v412 = vsel %vm389, %v388, 0
        %vm414 = vcmask 1041408
        %v416 = vsel %vm414, %v375, 0
        %418 = vmatprep.subr.bf16.mxu0 0
        %419 = vmatpush1.bf16.msra.mxu0 0
        %420 = vmatprep.subr.bf16.mxu0 0
        %421 = vmatpush1.bf16.msra.mxu0 0
        %422 = vmatprep.subr.bf16.mxu0 0
        %423 = vmatpush1.bf16.msra.mxu0 0
        %424 = vmatprep.subr.bf16.mxu0 0
        %425 = vmatpush1.bf16.msra.mxu0 0
        %426 = vmatprep.subr.bf16.mxu0 0
        %427 = vmatpush1.bf16.msra.mxu0 0
        %428 = vmatprep.subr.bf16.mxu0 0
        %429 = vmatpush1.bf16.msra.mxu0 0
        %430 = vmatprep.subr.bf16.mxu0 0
        %431 = vmatpush1.bf16.msra.mxu0 0
        %432 = vmatprep.subr.bf16.mxu0 0
        %433 = vmatpush1.bf16.msra.mxu0 %v416
        %434 = vmatprep.subr.bf16.mxu0 0
        %435 = vmatpush2.bf16.msra.mxu0 0
        %436 = vmatprep.subr.bf16.mxu0 0
        %437 = vmatpush2.bf16.msra.mxu0 0
        %438 = vmatprep.subr.bf16.mxu0 0
        %439 = vmatpush2.bf16.msra.mxu0 0
        %440 = vmatprep.subr.bf16.mxu0 0
        %441 = vmatpush2.bf16.msra.mxu0 0
        %442 = vmatprep.subr.bf16.mxu0 0
        %443 = vmatpush2.bf16.msra.mxu0 0
        %444 = vmatprep.subr.bf16.mxu0 0
        %445 = vmatpush2.bf16.msra.mxu0 0
        %446 = vmatprep.subr.bf16.mxu0 0
        %447 = vmatpush2.bf16.msra.mxu0 0
        %448 = vmatprep.subr.bf16.mxu0 0
        %449 = vmatpush2.bf16.msra.mxu0 0
        %450 = vmatprep.mubr.bf16.mxu0 0
        %451 = vmatmul.mubr.bf16.gmra.mxu0 %v391
        %v452 = vpop.f32.mrf.mxu0
        %v453 = vadd.f32 0.0, %v452
        %v454 = vpop.f32.mrf.mxu0
        %v455 = vpop.f32.mrf.mxu0
        %v456 = vadd.f32 0.0, %v455
        %v457 = vpop.f32.mrf.mxu0
        %458 = vmatprep.mubr.bf16.mxu0 0
        %459 = vmatmul.mubr.bf16.gmra.mxu0 %v394
        %v460 = vpop.f32.mrf.mxu0
        %v461 = vadd.f32 0.0, %v460
        %v462 = vpop.f32.mrf.mxu0
        %v463 = vpop.f32.mrf.mxu0
        %v464 = vadd.f32 0.0, %v463
        %v465 = vpop.f32.mrf.mxu0
        %466 = vmatprep.mubr.bf16.mxu0 0
        %467 = vmatmul.mubr.bf16.gmra.mxu0 %v397
        %v468 = vpop.f32.mrf.mxu0
        %v469 = vadd.f32 0.0, %v468
        %v470 = vpop.f32.mrf.mxu0
        %v471 = vpop.f32.mrf.mxu0
        %v472 = vadd.f32 0.0, %v471
        %v473 = vpop.f32.mrf.mxu0
        %474 = vmatprep.mubr.bf16.mxu0 0
        %475 = vmatmul.mubr.bf16.gmra.mxu0 %v400
        %v476 = vpop.f32.mrf.mxu0
        %v477 = vadd.f32 0.0, %v476
        %v478 = vpop.f32.mrf.mxu0
        %v479 = vpop.f32.mrf.mxu0
        %v480 = vadd.f32 0.0, %v479
        %v481 = vpop.f32.mrf.mxu0
        %482 = vmatprep.mubr.bf16.mxu0 0
        %483 = vmatmul.mubr.bf16.gmra.mxu0 %v403
        %v484 = vpop.f32.mrf.mxu0
        %v485 = vadd.f32 0.0, %v484
        %v486 = vpop.f32.mrf.mxu0
        %v487 = vpop.f32.mrf.mxu0
        %v488 = vadd.f32 0.0, %v487
        %v489 = vpop.f32.mrf.mxu0
        %490 = vmatprep.mubr.bf16.mxu0 0
        %491 = vmatmul.mubr.bf16.gmra.mxu0 %v406
        %v492 = vpop.f32.mrf.mxu0
        %v493 = vadd.f32 0.0, %v492
        %v494 = vpop.f32.mrf.mxu0
        %v495 = vpop.f32.mrf.mxu0
        %v496 = vadd.f32 0.0, %v495
        %v497 = vpop.f32.mrf.mxu0
        %498 = vmatprep.mubr.bf16.mxu0 0
        %499 = vmatmul.mubr.bf16.gmra.mxu0 %v409
        %v500 = vpop.f32.mrf.mxu0
        %v501 = vadd.f32 0.0, %v500
        %v502 = vpop.f32.mrf.mxu0
        %v503 = vpop.f32.mrf.mxu0
        %v504 = vadd.f32 0.0, %v503
        %v505 = vpop.f32.mrf.mxu0
        %506 = vmatprep.mubr.bf16.mxu0 0
        %507 = vmatmul.mubr.bf16.gmra.mxu0 %v412
        %v508 = vpop.f32.mrf.mxu0
        %v509 = vadd.f32 0.0, %v508
        %v510 = vpop.f32.mrf.mxu0
        %v511 = vpop.f32.mrf.mxu0
        %v512 = vadd.f32 0.0, %v511
        %v513 = vpop.f32.mrf.mxu0
        %514 = vdwg.mxu0
        %vm515 = vcmask 261120
        %v516 = vsel %vm515, %v453, -inf
        %v517 = vrot.slane %v516, 4
        %v518 = vmax.f32 %v516, %v517
        %v519 = vrot.slane %v518, 2
        %v520 = vmax.f32 %v518, %v519
        %v521 = vrot.slane %v520, 1
        %v522 = vmax.f32 %v520, %v521
        %v523 = vsel %vm515, %v456, -inf
        %v524 = vrot.slane %v523, 4
        %v525 = vmax.f32 %v523, %v524
        %v526 = vrot.slane %v525, 2
        %v527 = vmax.f32 %v525, %v526
        %v528 = vrot.slane %v527, 1
        %v529 = vmax.f32 %v527, %v528
        %v530 = vsel %vm515, %v461, -inf
        %v531 = vrot.slane %v530, 4
        %v532 = vmax.f32 %v530, %v531
        %v533 = vrot.slane %v532, 2
        %v534 = vmax.f32 %v532, %v533
        %v535 = vrot.slane %v534, 1
        %v536 = vmax.f32 %v534, %v535
        %v537 = vsel %vm515, %v464, -inf
        %v538 = vrot.slane %v537, 4
        %v539 = vmax.f32 %v537, %v538
        %v540 = vrot.slane %v539, 2
        %v541 = vmax.f32 %v539, %v540
        %v542 = vrot.slane %v541, 1
        %v543 = vmax.f32 %v541, %v542
        %v544 = vsel %vm515, %v469, -inf
        %v545 = vrot.slane %v544, 4
        %v546 = vmax.f32 %v544, %v545
        %v547 = vrot.slane %v546, 2
        %v548 = vmax.f32 %v546, %v547
        %v549 = vrot.slane %v548, 1
        %v550 = vmax.f32 %v548, %v549
        %v551 = vsel %vm515, %v472, -inf
        %v552 = vrot.slane %v551, 4
        %v553 = vmax.f32 %v551, %v552
        %v554 = vrot.slane %v553, 2
        %v555 = vmax.f32 %v553, %v554
        %v556 = vrot.slane %v555, 1
        %v557 = vmax.f32 %v555, %v556
        %v558 = vsel %vm515, %v477, -inf
        %v559 = vrot.slane %v558, 4
        %v560 = vmax.f32 %v558, %v559
        %v561 = vrot.slane %v560, 2
        %v562 = vmax.f32 %v560, %v561
        %v563 = vrot.slane %v562, 1
        %v564 = vmax.f32 %v562, %v563
        %v565 = vsel %vm515, %v480, -inf
        %v566 = vrot.slane %v565, 4
        %v567 = vmax.f32 %v565, %v566
        %v568 = vrot.slane %v567, 2
        %v569 = vmax.f32 %v567, %v568
        %v570 = vrot.slane %v569, 1
        %v571 = vmax.f32 %v569, %v570
        %v572 = vsel %vm515, %v485, -inf
        %v573 = vsel %vm515, %v488, -inf
        %v574 = vsel %vm515, %v493, -inf
        %v575 = vsel %vm515, %v496, -inf
        %v576 = vsel %vm515, %v501, -inf
        %v577 = vmax.f32 %v572, %v576
        %v578 = vsel %vm515, %v504, -inf
        %v579 = vmax.f32 %v573, %v578
        %v580 = vsel %vm515, %v509, -inf
        %v581 = vmax.f32 %v574, %v580
        %v582 = vsel %vm515, %v512, -inf
        %v583 = vmax.f32 %v575, %v582
        %v584 = vmax.f32 %v577, %v579
        %v585 = vmax.f32 %v581, %v583
        %v586 = vmax.f32 %v584, %v585
        %vm595 = vcmask 1041409
        %v596 = vsel %vm595, %v529, %v522
        %vm597 = vcmask 1042434
        %v598 = vsel %vm597, %v536, %v596
        %vm599 = vcmask 1043459
        %v600 = vsel %vm599, %v543, %v598
        %vm601 = vcmask 1044484
        %v602 = vsel %vm601, %v550, %v600
        %vm603 = vcmask 1045509
        %v604 = vsel %vm603, %v557, %v602
        %vm605 = vcmask 1046534
        %v606 = vsel %vm605, %v564, %v604
        %vm607 = vcmask 1047559
        %v608 = vsel %vm607, %v571, %v606
        %v610 = vpack.c.bf16 %v586, %v608
        %v611 = vlaneseq
        %v612 = vshrl.u32 %v611, 7
        %v613 = vsub.s32 0, %v612
        %v614 = vrot.slane %v380, %v613
        %v619 = vunpack.c.l.b16 %v376
        %v620 = vunpack.c.l.b16 %v377
        %v621 = vunpack.c.l.b16 %v378
        %v622 = vunpack.c.l.b16 %v379
        %v623 = vpack.c.b16 %v620, %v619
        %v624 = vpack.c.b16 %v622, %v621
        %v628 = vsel %vm515, %v610, 0
        %630 = vmatprep.subr.bf16.mxu0 0
        %631 = vmatpush1.bf16.msra.mxu0 0
        %632 = vmatprep.subr.bf16.mxu0 0
        %633 = vmatpush1.bf16.msra.mxu0 0
        %634 = vmatprep.subr.bf16.mxu0 0
        %635 = vmatpush1.bf16.msra.mxu0 0
        %636 = vmatprep.subr.bf16.mxu0 0
        %637 = vmatpush1.bf16.msra.mxu0 0
        %638 = vmatprep.subr.bf16.mxu0 0
        %639 = vmatpush1.bf16.msra.mxu0 0
        %640 = vmatprep.subr.bf16.mxu0 0
        %641 = vmatpush1.bf16.msra.mxu0 0
        %642 = vmatprep.subr.bf16.mxu0 0
        %643 = vmatpush1.bf16.msra.mxu0 %v624
        %644 = vmatprep.subr.bf16.mxu0 0
        %645 = vmatpush1.bf16.msra.mxu0 %v623
        %646 = vmatprep.subr.bf16.mxu0 0
        %647 = vmatpush2.bf16.msra.mxu0 0
        %648 = vmatprep.subr.bf16.mxu0 0
        %649 = vmatpush2.bf16.msra.mxu0 0
        %650 = vmatprep.subr.bf16.mxu0 0
        %651 = vmatpush2.bf16.msra.mxu0 0
        %652 = vmatprep.subr.bf16.mxu0 0
        %653 = vmatpush2.bf16.msra.mxu0 0
        %654 = vmatprep.subr.bf16.mxu0 0
        %655 = vmatpush2.bf16.msra.mxu0 0
        %656 = vmatprep.subr.bf16.mxu0 0
        %657 = vmatpush2.bf16.msra.mxu0 0
        %658 = vmatprep.subr.bf16.mxu0 0
        %659 = vmatpush2.bf16.msra.mxu0 0
        %660 = vmatprep.subr.bf16.mxu0 0
        %661 = vmatpush2.bf16.msra.mxu0 0
        %662 = vmatprep.mubr.bf16.mxu0 0
        %663 = vmatmul.mubr.bf16.gmra.mxu0 %v628
        %v664 = vpop.f32.mrf.mxu0
        %v665 = vadd.f32 %v614, %v664
        %v666 = vpop.f32.mrf.mxu0
        %v667 = vpop.f32.mrf.mxu0
        %v668 = vadd.f32 %v614, %v667
        %v669 = vpop.f32.mrf.mxu0
        %670 = vdwg.mxu0
        %v672 = vcombine.high %v665, %v665
        %v674 = vunpack.c.l.s4 1966171168
        %v675 = vunpack.c.0.s8 %v674
        %v676 = vlaneseq
        %v677 = vshrl.u32 %v676, 7
        %v678 = vsub.s32 %v675, %v677
        %v679 = vrot.slane %v665, %v678
        %v681 = vunpack.c.l.s4 1966171168
        %v682 = vunpack.c.0.s8 %v681
        %v683 = vlaneseq
        %v684 = vshrl.u32 %v683, 7
        %v685 = vsub.s32 %v682, %v684
        %v686 = vrot.slane %v672, %v685
        %v687 = vcombine.high %v679, %v679
        %v688 = vcombine.high %v686, %v686
        %v690 = vunpack.c.l.s4 1966171168
        %v691 = vunpack.c.0.s8 %v690
        %v692 = vlaneseq
        %v693 = vshrl.u32 %v692, 7
        %v694 = vsub.s32 %v691, %v693
        %v695 = vrot.slane %v679, %v694
        %v697 = vunpack.c.l.s4 1966171168
        %v698 = vunpack.c.0.s8 %v697
        %v699 = vlaneseq
        %v700 = vshrl.u32 %v699, 7
        %v701 = vsub.s32 %v698, %v700
        %v702 = vrot.slane %v686, %v701
        %v704 = vunpack.c.l.s4 1966171168
        %v705 = vunpack.c.0.s8 %v704
        %v706 = vlaneseq
        %v707 = vshrl.u32 %v706, 7
        %v708 = vsub.s32 %v705, %v707
        %v709 = vrot.slane %v687, %v708
        %v711 = vunpack.c.l.s4 1966171168
        %v712 = vunpack.c.0.s8 %v711
        %v713 = vlaneseq
        %v714 = vshrl.u32 %v713, 7
        %v715 = vsub.s32 %v712, %v714
        %v716 = vrot.slane %v688, %v715
        %v717 = vcombine.high %v695, %v695
        %v718 = vcombine.high %v702, %v702
        %v719 = vcombine.high %v709, %v709
        %v720 = vcombine.high %v716, %v716
        %v721 = vlaneseq
        %v722 = vshrl.u32 %v721, 7
        %v723 = vsub.s32 0, %v722
        %v724 = vrot.slane %v695, %v723
        %v725 = vlaneseq
        %v726 = vshrl.u32 %v725, 7
        %v727 = vsub.s32 0, %v726
        %v728 = vrot.slane %v709, %v727
        %v729 = vlaneseq
        %v730 = vshrl.u32 %v729, 7
        %v731 = vsub.s32 0, %v730
        %v732 = vrot.slane %v717, %v731
        %v733 = vlaneseq
        %v734 = vshrl.u32 %v733, 7
        %v735 = vsub.s32 0, %v734
        %v736 = vrot.slane %v719, %v735
        %v737 = vlaneseq
        %v738 = vshrl.u32 %v737, 7
        %v739 = vsub.s32 0, %v738
        %v740 = vrot.slane %v702, %v739
        %v741 = vlaneseq
        %v742 = vshrl.u32 %v741, 7
        %v743 = vsub.s32 0, %v742
        %v744 = vrot.slane %v716, %v743
        %v745 = vlaneseq
        %v746 = vshrl.u32 %v745, 7
        %v747 = vsub.s32 0, %v746
        %v748 = vrot.slane %v718, %v747
        %v749 = vlaneseq
        %v750 = vshrl.u32 %v749, 7
        %v751 = vsub.s32 0, %v750
        %v752 = vrot.slane %v720, %v751
        %753 = vrot.lane.b32.xlu0 %v724, 32
        %v754 = vpop.permute.xlu0 %753
        %755 = vrot.lane.b32.xlu0 %v728, 32
        %v756 = vpop.permute.xlu0 %755
        %757 = vrot.lane.b32.xlu0 %v732, 32
        %v758 = vpop.permute.xlu0 %757
        %759 = vrot.lane.b32.xlu0 %v736, 32
        %v760 = vpop.permute.xlu0 %759
        %761 = vrot.lane.b32.xlu0 %v740, 32
        %v762 = vpop.permute.xlu0 %761
        %763 = vrot.lane.b32.xlu0 %v744, 32
        %v764 = vpop.permute.xlu0 %763
        %765 = vrot.lane.b32.xlu0 %v748, 32
        %v766 = vpop.permute.xlu0 %765
        %767 = vrot.lane.b32.xlu0 %v752, 32
        %v768 = vpop.permute.xlu0 %767
        %v777 = vadd.f32 %v453, %v754
        %v778 = vadd.f32 %v456, %v756
        %v779 = vadd.f32 %v461, %v758
        %v780 = vadd.f32 %v464, %v760
        %v781 = vadd.f32 %v469, %v762
        %v782 = vadd.f32 %v472, %v764
        %v783 = vadd.f32 %v477, %v766
        %v784 = vadd.f32 %v480, %v768
        %786 = vrot.lane.b32.xlu0 %v668, 32
        %v787 = vpop.permute.xlu0 %786
        %v789 = vadd.f32 %v485, %v787
        %v790 = vadd.f32 %v488, %v787
        %v791 = vadd.f32 %v493, %v787
        %v792 = vadd.f32 %v496, %v787
        %v793 = vadd.f32 %v501, %v787
        %v794 = vadd.f32 %v504, %v787
        %v795 = vadd.f32 %v509, %v787
        %v796 = vadd.f32 %v512, %v787
        %vm797 = vcmp.ge.f32.partialorder %v777, 0.0
        %vm798 = vcmp.ge.f32.partialorder %v778, 0.0
        %vm799 = vcmp.ge.f32.partialorder %v779, 0.0
        %vm800 = vcmp.ge.f32.partialorder %v780, 0.0
        %vm801 = vcmp.ge.f32.partialorder %v781, 0.0
        %vm802 = vcmp.ge.f32.partialorder %v782, 0.0
        %vm803 = vcmp.ge.f32.partialorder %v783, 0.0
        %vm804 = vcmp.ge.f32.partialorder %v784, 0.0
        %v805 = vlaneseq
        %v806 = vshrl.u32 %v805, 7
        %v807 = vsub.s32 1, %v806
        %v808 = vrot.slane %v380, %v807
        %817 = vrot.lane.b32.xlu0 %v777, 96
        %v818 = vpop.permute.xlu0 %817
        %819 = vrot.lane.b32.xlu0 %v778, 96
        %v820 = vpop.permute.xlu0 %819
        %821 = vrot.lane.b32.xlu0 %v779, 96
        %v822 = vpop.permute.xlu0 %821
        %823 = vrot.lane.b32.xlu0 %v780, 96
        %v824 = vpop.permute.xlu0 %823
        %825 = vrot.lane.b32.xlu0 %v781, 96
        %v826 = vpop.permute.xlu0 %825
        %827 = vrot.lane.b32.xlu0 %v782, 96
        %v828 = vpop.permute.xlu0 %827
        %829 = vrot.lane.b32.xlu0 %v783, 96
        %v830 = vpop.permute.xlu0 %829
        %831 = vrot.lane.b32.xlu0 %v784, 96
        %v832 = vpop.permute.xlu0 %831
        %v841 = vmul.f32 %v808, %v818
        %v842 = vmul.f32 %v808, %v820
        %v843 = vmul.f32 %v808, %v822
        %v844 = vmul.f32 %v808, %v824
        %v845 = vmul.f32 %v808, %v826
        %v846 = vmul.f32 %v808, %v828
        %v847 = vmul.f32 %v808, %v830
        %v848 = vmul.f32 %v808, %v832
        %857 = vrot.lane.b32.xlu0 %v841, 32
        %v858 = vpop.permute.xlu0 %857
        %859 = vrot.lane.b32.xlu0 %v842, 32
        %v860 = vpop.permute.xlu0 %859
        %861 = vrot.lane.b32.xlu0 %v843, 32
        %v862 = vpop.permute.xlu0 %861
        %863 = vrot.lane.b32.xlu0 %v844, 32
        %v864 = vpop.permute.xlu0 %863
        %865 = vrot.lane.b32.xlu0 %v845, 32
        %v866 = vpop.permute.xlu0 %865
        %867 = vrot.lane.b32.xlu0 %v846, 32
        %v868 = vpop.permute.xlu0 %867
        %869 = vrot.lane.b32.xlu0 %v847, 32
        %v870 = vpop.permute.xlu0 %869
        %871 = vrot.lane.b32.xlu0 %v848, 32
        %v872 = vpop.permute.xlu0 %871
        %v881 = vsel %vm797, %v777, %v858
        %v882 = vsel %vm798, %v778, %v860
        %v883 = vsel %vm799, %v779, %v862
        %v884 = vsel %vm800, %v780, %v864
        %v885 = vsel %vm801, %v781, %v866
        %v886 = vsel %vm802, %v782, %v868
        %v887 = vsel %vm803, %v783, %v870
        %v888 = vsel %vm804, %v784, %v872
        %vm889 = vcmp.ge.f32.partialorder %v789, 0.0
        %vm890 = vcmp.ge.f32.partialorder %v790, 0.0
        %vm891 = vcmp.ge.f32.partialorder %v791, 0.0
        %vm892 = vcmp.ge.f32.partialorder %v792, 0.0
        %vm893 = vcmp.ge.f32.partialorder %v793, 0.0
        %vm894 = vcmp.ge.f32.partialorder %v794, 0.0
        %vm895 = vcmp.ge.f32.partialorder %v795, 0.0
        %vm896 = vcmp.ge.f32.partialorder %v796, 0.0
        %905 = vrot.lane.b32.xlu0 %v789, 96
        %v906 = vpop.permute.xlu0 %905
        %907 = vrot.lane.b32.xlu0 %v790, 96
        %v908 = vpop.permute.xlu0 %907
        %909 = vrot.lane.b32.xlu0 %v791, 96
        %v910 = vpop.permute.xlu0 %909
        %911 = vrot.lane.b32.xlu0 %v792, 96
        %v912 = vpop.permute.xlu0 %911
        %913 = vrot.lane.b32.xlu0 %v793, 96
        %v914 = vpop.permute.xlu0 %913
        %915 = vrot.lane.b32.xlu0 %v794, 96
        %v916 = vpop.permute.xlu0 %915
        %917 = vrot.lane.b32.xlu0 %v795, 96
        %v918 = vpop.permute.xlu0 %917
        %919 = vrot.lane.b32.xlu0 %v796, 96
        %v920 = vpop.permute.xlu0 %919
        %v929 = vmul.f32 %v808, %v906
        %v930 = vmul.f32 %v808, %v908
        %v931 = vmul.f32 %v808, %v910
        %v932 = vmul.f32 %v808, %v912
        %v933 = vmul.f32 %v808, %v914
        %v934 = vmul.f32 %v808, %v916
        %v935 = vmul.f32 %v808, %v918
        %v936 = vmul.f32 %v808, %v920
        %945 = vrot.lane.b32.xlu0 %v929, 32
        %v946 = vpop.permute.xlu0 %945
        %947 = vrot.lane.b32.xlu0 %v930, 32
        %v948 = vpop.permute.xlu0 %947
        %949 = vrot.lane.b32.xlu0 %v931, 32
        %v950 = vpop.permute.xlu0 %949
        %951 = vrot.lane.b32.xlu0 %v932, 32
        %v952 = vpop.permute.xlu0 %951
        %953 = vrot.lane.b32.xlu0 %v933, 32
        %v954 = vpop.permute.xlu0 %953
        %955 = vrot.lane.b32.xlu0 %v934, 32
        %v956 = vpop.permute.xlu0 %955
        %957 = vrot.lane.b32.xlu0 %v935, 32
        %v958 = vpop.permute.xlu0 %957
        %959 = vrot.lane.b32.xlu0 %v936, 32
        %v960 = vpop.permute.xlu0 %959
        %v969 = vsel %vm889, %v789, %v946
        %v970 = vsel %vm890, %v790, %v948
        %v971 = vsel %vm891, %v791, %v950
        %v972 = vsel %vm892, %v792, %v952
        %v973 = vsel %vm893, %v793, %v954
        %v974 = vsel %vm894, %v794, %v956
        %v975 = vsel %vm895, %v795, %v958
        %v976 = vsel %vm896, %v796, %v960
        %v977 = vld [vmem:[%s4] sm:$0xf]
        %v978 = vld [vmem:[%s4 + $0x4] sm:$0xf]
        %v979 = vld [vmem:[%s4 + $0x8] sm:$0xf]
        %v980 = vld [vmem:[%s4 + $0xc] sm:$0xf]
        %v981 = vld [vmem:[%s4 + $0x10] sm:$0xf]
        %v982 = vld [vmem:[%s4 + $0x14] sm:$0xf]
        %v983 = vld [vmem:[%s4 + $0x18] sm:$0xf]
        %v984 = vld [vmem:[%s4 + $0x1c] sm:$0xf]
        %v985 = vld [vmem:[%s5] sm:$0xf]
        %v986 = vld [vmem:[%s5 + $0x4] sm:$0xf]
        %v987 = vld [vmem:[%s5 + $0x8] sm:$0xf]
        %v988 = vld [vmem:[%s5 + $0xc] sm:$0xf]
        %v989 = vld [vmem:[%s6] sm:$0x3]
        %v990 = vpack.c.bf16 %v882, %v881
        %v991 = vpack.c.bf16 %v884, %v883
        %v992 = vpack.c.bf16 %v886, %v885
        %v993 = vpack.c.bf16 %v888, %v887
        %v994 = vpack.c.bf16 %v970, %v969
        %v995 = vpack.c.bf16 %v972, %v971
        %v996 = vpack.c.bf16 %v974, %v973
        %v997 = vpack.c.bf16 %v976, %v975
        %1006 = vrot.lane.b32.xlu0 %v990, 96
        %v1007 = vpop.permute.xlu0 %1006
        %1008 = vrot.lane.b32.xlu0 %v991, 96
        %v1009 = vpop.permute.xlu0 %1008
        %1010 = vrot.lane.b32.xlu0 %v992, 96
        %v1011 = vpop.permute.xlu0 %1010
        %1012 = vrot.lane.b32.xlu0 %v993, 96
        %v1013 = vpop.permute.xlu0 %1012
        %1014 = vrot.lane.b32.xlu0 %v994, 96
        %v1015 = vpop.permute.xlu0 %1014
        %1016 = vrot.lane.b32.xlu0 %v995, 96
        %v1017 = vpop.permute.xlu0 %1016
        %1018 = vrot.lane.b32.xlu0 %v996, 96
        %v1019 = vpop.permute.xlu0 %1018
        %1020 = vrot.lane.b32.xlu0 %v997, 96
        %v1021 = vpop.permute.xlu0 %1020
        %v1026 = vunpack.c.l.b16 %v981
        %v1027 = vunpack.c.l.b16 %v982
        %v1028 = vunpack.c.l.b16 %v983
        %v1029 = vunpack.c.l.b16 %v984
        %v1030 = vpack.c.b16 %v1027, %v1026
        %v1031 = vpack.c.b16 %v1029, %v1028
        %v1035 = vsel %vm515, %v1007, 0
        %v1038 = vsel %vm515, %v1009, 0
        %v1041 = vsel %vm515, %v1011, 0
        %v1044 = vsel %vm515, %v1013, 0
        %v1047 = vsel %vm515, %v1015, 0
        %v1050 = vsel %vm515, %v1017, 0
        %v1053 = vsel %vm515, %v1019, 0
        %v1056 = vsel %vm515, %v1021, 0
        %1058 = vmatprep.subr.bf16.mxu0 0
        %1059 = vmatpush1.bf16.msra.mxu0 0
        %1060 = vmatprep.subr.bf16.mxu0 0
        %1061 = vmatpush1.bf16.msra.mxu0 0
        %1062 = vmatprep.subr.bf16.mxu0 0
        %1063 = vmatpush1.bf16.msra.mxu0 0
        %1064 = vmatprep.subr.bf16.mxu0 0
        %1065 = vmatpush1.bf16.msra.mxu0 0
        %1066 = vmatprep.subr.bf16.mxu0 0
        %1067 = vmatpush1.bf16.msra.mxu0 0
        %1068 = vmatprep.subr.bf16.mxu0 0
        %1069 = vmatpush1.bf16.msra.mxu0 0
        %1070 = vmatprep.subr.bf16.mxu0 0
        %1071 = vmatpush1.bf16.msra.mxu0 %v1031
        %1072 = vmatprep.subr.bf16.mxu0 0
        %1073 = vmatpush1.bf16.msra.mxu0 %v1030
        %1074 = vmatprep.subr.bf16.mxu0 0
        %1075 = vmatpush2.bf16.msra.mxu0 0
        %1076 = vmatprep.subr.bf16.mxu0 0
        %1077 = vmatpush2.bf16.msra.mxu0 0
        %1078 = vmatprep.subr.bf16.mxu0 0
        %1079 = vmatpush2.bf16.msra.mxu0 0
        %1080 = vmatprep.subr.bf16.mxu0 0
        %1081 = vmatpush2.bf16.msra.mxu0 0
        %1082 = vmatprep.subr.bf16.mxu0 0
        %1083 = vmatpush2.bf16.msra.mxu0 0
        %1084 = vmatprep.subr.bf16.mxu0 0
        %1085 = vmatpush2.bf16.msra.mxu0 0
        %1086 = vmatprep.subr.bf16.mxu0 0
        %1087 = vmatpush2.bf16.msra.mxu0 0
        %1088 = vmatprep.subr.bf16.mxu0 0
        %1089 = vmatpush2.bf16.msra.mxu0 0
        %1090 = vmatprep.mubr.bf16.mxu0 0
        %1091 = vmatmul.mubr.bf16.gmra.mxu0 %v1035
        %v1092 = vpop.f32.mrf.mxu0
        %v1093 = vadd.f32 0.0, %v1092
        %v1094 = vpop.f32.mrf.mxu0
        %v1095 = vpop.f32.mrf.mxu0
        %v1096 = vadd.f32 0.0, %v1095
        %v1097 = vpop.f32.mrf.mxu0
        %1098 = vmatprep.mubr.bf16.mxu0 0
        %1099 = vmatmul.mubr.bf16.gmra.mxu0 %v1038
        %v1100 = vpop.f32.mrf.mxu0
        %v1101 = vadd.f32 0.0, %v1100
        %v1102 = vpop.f32.mrf.mxu0
        %v1103 = vpop.f32.mrf.mxu0
        %v1104 = vadd.f32 0.0, %v1103
        %v1105 = vpop.f32.mrf.mxu0
        %1106 = vmatprep.mubr.bf16.mxu0 0
        %1107 = vmatmul.mubr.bf16.gmra.mxu0 %v1041
        %v1108 = vpop.f32.mrf.mxu0
        %v1109 = vadd.f32 0.0, %v1108
        %v1110 = vpop.f32.mrf.mxu0
        %v1111 = vpop.f32.mrf.mxu0
        %v1112 = vadd.f32 0.0, %v1111
        %v1113 = vpop.f32.mrf.mxu0
        %1114 = vmatprep.mubr.bf16.mxu0 0
        %1115 = vmatmul.mubr.bf16.gmra.mxu0 %v1044
        %v1116 = vpop.f32.mrf.mxu0
        %v1117 = vadd.f32 0.0, %v1116
        %v1118 = vpop.f32.mrf.mxu0
        %v1119 = vpop.f32.mrf.mxu0
        %v1120 = vadd.f32 0.0, %v1119
        %v1121 = vpop.f32.mrf.mxu0
        %1122 = vmatprep.mubr.bf16.mxu0 0
        %1123 = vmatmul.mubr.bf16.gmra.mxu0 %v1047
        %v1124 = vpop.f32.mrf.mxu0
        %v1125 = vadd.f32 0.0, %v1124
        %v1126 = vpop.f32.mrf.mxu0
        %v1127 = vpop.f32.mrf.mxu0
        %v1128 = vadd.f32 0.0, %v1127
        %v1129 = vpop.f32.mrf.mxu0
        %1130 = vmatprep.mubr.bf16.mxu0 0
        %1131 = vmatmul.mubr.bf16.gmra.mxu0 %v1050
        %v1132 = vpop.f32.mrf.mxu0
        %v1133 = vadd.f32 0.0, %v1132
        %v1134 = vpop.f32.mrf.mxu0
        %v1135 = vpop.f32.mrf.mxu0
        %v1136 = vadd.f32 0.0, %v1135
        %v1137 = vpop.f32.mrf.mxu0
        %1138 = vmatprep.mubr.bf16.mxu0 0
        %1139 = vmatmul.mubr.bf16.gmra.mxu0 %v1053
        %v1140 = vpop.f32.mrf.mxu0
        %v1141 = vadd.f32 0.0, %v1140
        %v1142 = vpop.f32.mrf.mxu0
        %v1143 = vpop.f32.mrf.mxu0
        %v1144 = vadd.f32 0.0, %v1143
        %v1145 = vpop.f32.mrf.mxu0
        %1146 = vmatprep.mubr.bf16.mxu0 0
        %1147 = vmatmul.mubr.bf16.gmra.mxu0 %v1056
        %v1148 = vpop.f32.mrf.mxu0
        %v1149 = vadd.f32 0.0, %v1148
        %v1150 = vpop.f32.mrf.mxu0
        %v1151 = vpop.f32.mrf.mxu0
        %v1152 = vadd.f32 0.0, %v1151
        %v1153 = vpop.f32.mrf.mxu0
        %1154 = vdwg.mxu0
        %v1159 = vunpack.c.l.b16 %v977
        %v1160 = vunpack.c.l.b16 %v978
        %v1161 = vunpack.c.l.b16 %v979
        %v1162 = vunpack.c.l.b16 %v980
        %v1163 = vpack.c.b16 %v1160, %v1159
        %v1164 = vpack.c.b16 %v1162, %v1161
        %1167 = vmatprep.subr.bf16.mxu0 0
        %1168 = vmatpush1.bf16.msra.mxu0 0
        %1169 = vmatprep.subr.bf16.mxu0 0
        %1170 = vmatpush1.bf16.msra.mxu0 0
        %1171 = vmatprep.subr.bf16.mxu0 0
        %1172 = vmatpush1.bf16.msra.mxu0 0
        %1173 = vmatprep.subr.bf16.mxu0 0
        %1174 = vmatpush1.bf16.msra.mxu0 0
        %1175 = vmatprep.subr.bf16.mxu0 0
        %1176 = vmatpush1.bf16.msra.mxu0 0
        %1177 = vmatprep.subr.bf16.mxu0 0
        %1178 = vmatpush1.bf16.msra.mxu0 0
        %1179 = vmatprep.subr.bf16.mxu0 0
        %1180 = vmatpush1.bf16.msra.mxu0 %v1164
        %1181 = vmatprep.subr.bf16.mxu0 0
        %1182 = vmatpush1.bf16.msra.mxu0 %v1163
        %1183 = vmatprep.subr.bf16.mxu0 0
        %1184 = vmatpush2.bf16.msra.mxu0 0
        %1185 = vmatprep.subr.bf16.mxu0 0
        %1186 = vmatpush2.bf16.msra.mxu0 0
        %1187 = vmatprep.subr.bf16.mxu0 0
        %1188 = vmatpush2.bf16.msra.mxu0 0
        %1189 = vmatprep.subr.bf16.mxu0 0
        %1190 = vmatpush2.bf16.msra.mxu0 0
        %1191 = vmatprep.subr.bf16.mxu0 0
        %1192 = vmatpush2.bf16.msra.mxu0 0
        %1193 = vmatprep.subr.bf16.mxu0 0
        %1194 = vmatpush2.bf16.msra.mxu0 0
        %1195 = vmatprep.subr.bf16.mxu0 0
        %1196 = vmatpush2.bf16.msra.mxu0 0
        %1197 = vmatprep.subr.bf16.mxu0 0
        %1198 = vmatpush2.bf16.msra.mxu0 0
        %1199 = vmatprep.mubr.bf16.mxu0 0
        %1200 = vmatmul.mubr.bf16.gmra.mxu0 %v1035
        %v1201 = vpop.f32.mrf.mxu0
        %v1202 = vadd.f32 %v1125, %v1201
        %v1203 = vpop.f32.mrf.mxu0
        %v1204 = vpop.f32.mrf.mxu0
        %v1205 = vadd.f32 %v1128, %v1204
        %v1206 = vpop.f32.mrf.mxu0
        %1207 = vmatprep.mubr.bf16.mxu0 0
        %1208 = vmatmul.mubr.bf16.gmra.mxu0 %v1038
        %v1209 = vpop.f32.mrf.mxu0
        %v1210 = vadd.f32 %v1133, %v1209
        %v1211 = vpop.f32.mrf.mxu0
        %v1212 = vpop.f32.mrf.mxu0
        %v1213 = vadd.f32 %v1136, %v1212
        %v1214 = vpop.f32.mrf.mxu0
        %1215 = vmatprep.mubr.bf16.mxu0 0
        %1216 = vmatmul.mubr.bf16.gmra.mxu0 %v1041
        %v1217 = vpop.f32.mrf.mxu0
        %v1218 = vadd.f32 %v1141, %v1217
        %v1219 = vpop.f32.mrf.mxu0
        %v1220 = vpop.f32.mrf.mxu0
        %v1221 = vadd.f32 %v1144, %v1220
        %v1222 = vpop.f32.mrf.mxu0
        %1223 = vmatprep.mubr.bf16.mxu0 0
        %1224 = vmatmul.mubr.bf16.gmra.mxu0 %v1044
        %v1225 = vpop.f32.mrf.mxu0
        %v1226 = vadd.f32 %v1149, %v1225
        %v1227 = vpop.f32.mrf.mxu0
        %v1228 = vpop.f32.mrf.mxu0
        %v1229 = vadd.f32 %v1152, %v1228
        %v1230 = vpop.f32.mrf.mxu0
        %1231 = vmatprep.mubr.bf16.mxu0 0
        %1232 = vmatmul.mubr.bf16.gmra.mxu0 %v1047
        %v1233 = vpop.f32.mrf.mxu0
        %v1234 = vadd.f32 %v1093, %v1233
        %v1235 = vpop.f32.mrf.mxu0
        %v1236 = vpop.f32.mrf.mxu0
        %v1237 = vadd.f32 %v1096, %v1236
        %v1238 = vpop.f32.mrf.mxu0
        %1239 = vmatprep.mubr.bf16.mxu0 0
        %1240 = vmatmul.mubr.bf16.gmra.mxu0 %v1050
        %v1241 = vpop.f32.mrf.mxu0
        %v1242 = vadd.f32 %v1101, %v1241
        %v1243 = vpop.f32.mrf.mxu0
        %v1244 = vpop.f32.mrf.mxu0
        %v1245 = vadd.f32 %v1104, %v1244
        %v1246 = vpop.f32.mrf.mxu0
        %1247 = vmatprep.mubr.bf16.mxu0 0
        %1248 = vmatmul.mubr.bf16.gmra.mxu0 %v1053
        %v1249 = vpop.f32.mrf.mxu0
        %v1250 = vadd.f32 %v1109, %v1249
        %v1251 = vpop.f32.mrf.mxu0
        %v1252 = vpop.f32.mrf.mxu0
        %v1253 = vadd.f32 %v1112, %v1252
        %v1254 = vpop.f32.mrf.mxu0
        %1255 = vmatprep.mubr.bf16.mxu0 0
        %1256 = vmatmul.mubr.bf16.gmra.mxu0 %v1056
        %v1257 = vpop.f32.mrf.mxu0
        %v1258 = vadd.f32 %v1117, %v1257
        %v1259 = vpop.f32.mrf.mxu0
        %v1260 = vpop.f32.mrf.mxu0
        %v1261 = vadd.f32 %v1120, %v1260
        %v1262 = vpop.f32.mrf.mxu0
        %1263 = vdwg.mxu0
        %v1264 = vsel %vm515, %v1202, -inf
        %v1265 = vrot.slane %v1264, 4
        %v1266 = vmax.f32 %v1264, %v1265
        %v1267 = vrot.slane %v1266, 2
        %v1268 = vmax.f32 %v1266, %v1267
        %v1269 = vrot.slane %v1268, 1
        %v1270 = vmax.f32 %v1268, %v1269
        %v1271 = vsel %vm515, %v1205, -inf
        %v1272 = vrot.slane %v1271, 4
        %v1273 = vmax.f32 %v1271, %v1272
        %v1274 = vrot.slane %v1273, 2
        %v1275 = vmax.f32 %v1273, %v1274
        %v1276 = vrot.slane %v1275, 1
        %v1277 = vmax.f32 %v1275, %v1276
        %v1278 = vsel %vm515, %v1210, -inf
        %v1279 = vrot.slane %v1278, 4
        %v1280 = vmax.f32 %v1278, %v1279
        %v1281 = vrot.slane %v1280, 2
        %v1282 = vmax.f32 %v1280, %v1281
        %v1283 = vrot.slane %v1282, 1
        %v1284 = vmax.f32 %v1282, %v1283
        %v1285 = vsel %vm515, %v1213, -inf
        %v1286 = vrot.slane %v1285, 4
        %v1287 = vmax.f32 %v1285, %v1286
        %v1288 = vrot.slane %v1287, 2
        %v1289 = vmax.f32 %v1287, %v1288
        %v1290 = vrot.slane %v1289, 1
        %v1291 = vmax.f32 %v1289, %v1290
        %v1292 = vsel %vm515, %v1218, -inf
        %v1293 = vrot.slane %v1292, 4
        %v1294 = vmax.f32 %v1292, %v1293
        %v1295 = vrot.slane %v1294, 2
        %v1296 = vmax.f32 %v1294, %v1295
        %v1297 = vrot.slane %v1296, 1
        %v1298 = vmax.f32 %v1296, %v1297
        %v1299 = vsel %vm515, %v1221, -inf
        %v1300 = vrot.slane %v1299, 4
        %v1301 = vmax.f32 %v1299, %v1300
        %v1302 = vrot.slane %v1301, 2
        %v1303 = vmax.f32 %v1301, %v1302
        %v1304 = vrot.slane %v1303, 1
        %v1305 = vmax.f32 %v1303, %v1304
        %v1306 = vsel %vm515, %v1226, -inf
        %v1307 = vrot.slane %v1306, 4
        %v1308 = vmax.f32 %v1306, %v1307
        %v1309 = vrot.slane %v1308, 2
        %v1310 = vmax.f32 %v1308, %v1309
        %v1311 = vrot.slane %v1310, 1
        %v1312 = vmax.f32 %v1310, %v1311
        %v1313 = vsel %vm515, %v1229, -inf
        %v1314 = vrot.slane %v1313, 4
        %v1315 = vmax.f32 %v1313, %v1314
        %v1316 = vrot.slane %v1315, 2
        %v1317 = vmax.f32 %v1315, %v1316
        %v1318 = vrot.slane %v1317, 1
        %v1319 = vmax.f32 %v1317, %v1318
        %v1320 = vsel %vm515, %v1234, -inf
        %v1321 = vsel %vm515, %v1237, -inf
        %v1322 = vsel %vm515, %v1242, -inf
        %v1323 = vsel %vm515, %v1245, -inf
        %v1324 = vsel %vm515, %v1250, -inf
        %v1325 = vmax.f32 %v1320, %v1324
        %v1326 = vsel %vm515, %v1253, -inf
        %v1327 = vmax.f32 %v1321, %v1326
        %v1328 = vsel %vm515, %v1258, -inf
        %v1329 = vmax.f32 %v1322, %v1328
        %v1330 = vsel %vm515, %v1261, -inf
        %v1331 = vmax.f32 %v1323, %v1330
        %v1332 = vmax.f32 %v1325, %v1327
        %v1333 = vmax.f32 %v1329, %v1331
        %v1334 = vmax.f32 %v1332, %v1333
        %v1343 = vsel %vm595, %v1277, %v1270
        %v1344 = vsel %vm597, %v1284, %v1343
        %v1345 = vsel %vm599, %v1291, %v1344
        %v1346 = vsel %vm601, %v1298, %v1345
        %v1347 = vsel %vm603, %v1305, %v1346
        %v1348 = vsel %vm605, %v1312, %v1347
        %v1349 = vsel %vm607, %v1319, %v1348
        %v1351 = vpack.c.bf16 %v1334, %v1349
        %v1352 = vlaneseq
        %v1353 = vshrl.u32 %v1352, 7
        %v1354 = vsub.s32 0, %v1353
        %v1355 = vrot.slane %v989, %v1354
        %v1360 = vunpack.c.l.b16 %v985
        %v1361 = vunpack.c.l.b16 %v986
        %v1362 = vunpack.c.l.b16 %v987
        %v1363 = vunpack.c.l.b16 %v988
        %v1364 = vpack.c.b16 %v1361, %v1360
        %v1365 = vpack.c.b16 %v1363, %v1362
        %v1369 = vsel %vm515, %v1351, 0
        %1371 = vmatprep.subr.bf16.mxu0 0
        %1372 = vmatpush1.bf16.msra.mxu0 0
        %1373 = vmatprep.subr.bf16.mxu0 0
        %1374 = vmatpush1.bf16.msra.mxu0 0
        %1375 = vmatprep.subr.bf16.mxu0 0
        %1376 = vmatpush1.bf16.msra.mxu0 0
        %1377 = vmatprep.subr.bf16.mxu0 0
        %1378 = vmatpush1.bf16.msra.mxu0 0
        %1379 = vmatprep.subr.bf16.mxu0 0
        %1380 = vmatpush1.bf16.msra.mxu0 0
        %1381 = vmatprep.subr.bf16.mxu0 0
        %1382 = vmatpush1.bf16.msra.mxu0 0
        %1383 = vmatprep.subr.bf16.mxu0 0
        %1384 = vmatpush1.bf16.msra.mxu0 %v1365
        %1385 = vmatprep.subr.bf16.mxu0 0
        %1386 = vmatpush1.bf16.msra.mxu0 %v1364
        %1387 = vmatprep.subr.bf16.mxu0 0
        %1388 = vmatpush2.bf16.msra.mxu0 0
        %1389 = vmatprep.subr.bf16.mxu0 0
        %1390 = vmatpush2.bf16.msra.mxu0 0
        %1391 = vmatprep.subr.bf16.mxu0 0
        %1392 = vmatpush2.bf16.msra.mxu0 0
        %1393 = vmatprep.subr.bf16.mxu0 0
        %1394 = vmatpush2.bf16.msra.mxu0 0
        %1395 = vmatprep.subr.bf16.mxu0 0
        %1396 = vmatpush2.bf16.msra.mxu0 0
        %1397 = vmatprep.subr.bf16.mxu0 0
        %1398 = vmatpush2.bf16.msra.mxu0 0
        %1399 = vmatprep.subr.bf16.mxu0 0
        %1400 = vmatpush2.bf16.msra.mxu0 0
        %1401 = vmatprep.subr.bf16.mxu0 0
        %1402 = vmatpush2.bf16.msra.mxu0 0
        %1403 = vmatprep.mubr.bf16.mxu0 0
        %1404 = vmatmul.mubr.bf16.gmra.mxu0 %v1369
        %v1405 = vpop.f32.mrf.mxu0
        %v1406 = vadd.f32 %v1355, %v1405
        %v1407 = vpop.f32.mrf.mxu0
        %v1408 = vpop.f32.mrf.mxu0
        %v1409 = vadd.f32 %v1355, %v1408
        %v1410 = vpop.f32.mrf.mxu0
        %1411 = vdwg.mxu0
        %v1413 = vcombine.high %v1406, %v1406
        %v1415 = vunpack.c.l.s4 1966171168
        %v1416 = vunpack.c.0.s8 %v1415
        %v1417 = vlaneseq
        %v1418 = vshrl.u32 %v1417, 7
        %v1419 = vsub.s32 %v1416, %v1418
        %v1420 = vrot.slane %v1406, %v1419
        %v1422 = vunpack.c.l.s4 1966171168
        %v1423 = vunpack.c.0.s8 %v1422
        %v1424 = vlaneseq
        %v1425 = vshrl.u32 %v1424, 7
        %v1426 = vsub.s32 %v1423, %v1425
        %v1427 = vrot.slane %v1413, %v1426
        %v1428 = vcombine.high %v1420, %v1420
        %v1429 = vcombine.high %v1427, %v1427
        %v1431 = vunpack.c.l.s4 1966171168
        %v1432 = vunpack.c.0.s8 %v1431
        %v1433 = vlaneseq
        %v1434 = vshrl.u32 %v1433, 7
        %v1435 = vsub.s32 %v1432, %v1434
        %v1436 = vrot.slane %v1420, %v1435
        %v1438 = vunpack.c.l.s4 1966171168
        %v1439 = vunpack.c.0.s8 %v1438
        %v1440 = vlaneseq
        %v1441 = vshrl.u32 %v1440, 7
        %v1442 = vsub.s32 %v1439, %v1441
        %v1443 = vrot.slane %v1427, %v1442
        %v1445 = vunpack.c.l.s4 1966171168
        %v1446 = vunpack.c.0.s8 %v1445
        %v1447 = vlaneseq
        %v1448 = vshrl.u32 %v1447, 7
        %v1449 = vsub.s32 %v1446, %v1448
        %v1450 = vrot.slane %v1428, %v1449
        %v1452 = vunpack.c.l.s4 1966171168
        %v1453 = vunpack.c.0.s8 %v1452
        %v1454 = vlaneseq
        %v1455 = vshrl.u32 %v1454, 7
        %v1456 = vsub.s32 %v1453, %v1455
        %v1457 = vrot.slane %v1429, %v1456
        %v1458 = vcombine.high %v1436, %v1436
        %v1459 = vcombine.high %v1443, %v1443
        %v1460 = vcombine.high %v1450, %v1450
        %v1461 = vcombine.high %v1457, %v1457
        %v1462 = vlaneseq
        %v1463 = vshrl.u32 %v1462, 7
        %v1464 = vsub.s32 0, %v1463
        %v1465 = vrot.slane %v1436, %v1464
        %v1466 = vlaneseq
        %v1467 = vshrl.u32 %v1466, 7
        %v1468 = vsub.s32 0, %v1467
        %v1469 = vrot.slane %v1450, %v1468
        %v1470 = vlaneseq
        %v1471 = vshrl.u32 %v1470, 7
        %v1472 = vsub.s32 0, %v1471
        %v1473 = vrot.slane %v1458, %v1472
        %v1474 = vlaneseq
        %v1475 = vshrl.u32 %v1474, 7
        %v1476 = vsub.s32 0, %v1475
        %v1477 = vrot.slane %v1460, %v1476
        %v1478 = vlaneseq
        %v1479 = vshrl.u32 %v1478, 7
        %v1480 = vsub.s32 0, %v1479
        %v1481 = vrot.slane %v1443, %v1480
        %v1482 = vlaneseq
        %v1483 = vshrl.u32 %v1482, 7
        %v1484 = vsub.s32 0, %v1483
        %v1485 = vrot.slane %v1457, %v1484
        %v1486 = vlaneseq
        %v1487 = vshrl.u32 %v1486, 7
        %v1488 = vsub.s32 0, %v1487
        %v1489 = vrot.slane %v1459, %v1488
        %v1490 = vlaneseq
        %v1491 = vshrl.u32 %v1490, 7
        %v1492 = vsub.s32 0, %v1491
        %v1493 = vrot.slane %v1461, %v1492
        %1494 = vrot.lane.b32.xlu0 %v1465, 32
        %v1495 = vpop.permute.xlu0 %1494
        %1496 = vrot.lane.b32.xlu0 %v1469, 32
        %v1497 = vpop.permute.xlu0 %1496
        %1498 = vrot.lane.b32.xlu0 %v1473, 32
        %v1499 = vpop.permute.xlu0 %1498
        %1500 = vrot.lane.b32.xlu0 %v1477, 32
        %v1501 = vpop.permute.xlu0 %1500
        %1502 = vrot.lane.b32.xlu0 %v1481, 32
        %v1503 = vpop.permute.xlu0 %1502
        %1504 = vrot.lane.b32.xlu0 %v1485, 32
        %v1505 = vpop.permute.xlu0 %1504
        %1506 = vrot.lane.b32.xlu0 %v1489, 32
        %v1507 = vpop.permute.xlu0 %1506
        %1508 = vrot.lane.b32.xlu0 %v1493, 32
        %v1509 = vpop.permute.xlu0 %1508
        %v1518 = vadd.f32 %v1202, %v1495
        %v1519 = vadd.f32 %v1205, %v1497
        %v1520 = vadd.f32 %v1210, %v1499
        %v1521 = vadd.f32 %v1213, %v1501
        %v1522 = vadd.f32 %v1218, %v1503
        %v1523 = vadd.f32 %v1221, %v1505
        %v1524 = vadd.f32 %v1226, %v1507
        %v1525 = vadd.f32 %v1229, %v1509
        %1527 = vrot.lane.b32.xlu0 %v1409, 32
        %v1528 = vpop.permute.xlu0 %1527
        %v1530 = vadd.f32 %v1234, %v1528
        %v1531 = vadd.f32 %v1237, %v1528
        %v1532 = vadd.f32 %v1242, %v1528
        %v1533 = vadd.f32 %v1245, %v1528
        %v1534 = vadd.f32 %v1250, %v1528
        %v1535 = vadd.f32 %v1253, %v1528
        %v1536 = vadd.f32 %v1258, %v1528
        %v1537 = vadd.f32 %v1261, %v1528
        %vm1538 = vcmp.ge.f32.partialorder %v1518, 0.0
        %vm1539 = vcmp.ge.f32.partialorder %v1519, 0.0
        %vm1540 = vcmp.ge.f32.partialorder %v1520, 0.0
        %vm1541 = vcmp.ge.f32.partialorder %v1521, 0.0
        %vm1542 = vcmp.ge.f32.partialorder %v1522, 0.0
        %vm1543 = vcmp.ge.f32.partialorder %v1523, 0.0
        %vm1544 = vcmp.ge.f32.partialorder %v1524, 0.0
        %vm1545 = vcmp.ge.f32.partialorder %v1525, 0.0
        %v1546 = vlaneseq
        %v1547 = vshrl.u32 %v1546, 7
        %v1548 = vsub.s32 1, %v1547
        %v1549 = vrot.slane %v989, %v1548
        %1558 = vrot.lane.b32.xlu0 %v1518, 96
        %v1559 = vpop.permute.xlu0 %1558
        %1560 = vrot.lane.b32.xlu0 %v1519, 96
        %v1561 = vpop.permute.xlu0 %1560
        %1562 = vrot.lane.b32.xlu0 %v1520, 96
        %v1563 = vpop.permute.xlu0 %1562
        %1564 = vrot.lane.b32.xlu0 %v1521, 96
        %v1565 = vpop.permute.xlu0 %1564
        %1566 = vrot.lane.b32.xlu0 %v1522, 96
        %v1567 = vpop.permute.xlu0 %1566
        %1568 = vrot.lane.b32.xlu0 %v1523, 96
        %v1569 = vpop.permute.xlu0 %1568
        %1570 = vrot.lane.b32.xlu0 %v1524, 96
        %v1571 = vpop.permute.xlu0 %1570
        %1572 = vrot.lane.b32.xlu0 %v1525, 96
        %v1573 = vpop.permute.xlu0 %1572
        %v1582 = vmul.f32 %v1549, %v1559
        %v1583 = vmul.f32 %v1549, %v1561
        %v1584 = vmul.f32 %v1549, %v1563
        %v1585 = vmul.f32 %v1549, %v1565
        %v1586 = vmul.f32 %v1549, %v1567
        %v1587 = vmul.f32 %v1549, %v1569
        %v1588 = vmul.f32 %v1549, %v1571
        %v1589 = vmul.f32 %v1549, %v1573
        %1598 = vrot.lane.b32.xlu0 %v1582, 32
        %v1599 = vpop.permute.xlu0 %1598
        %1600 = vrot.lane.b32.xlu0 %v1583, 32
        %v1601 = vpop.permute.xlu0 %1600
        %1602 = vrot.lane.b32.xlu0 %v1584, 32
        %v1603 = vpop.permute.xlu0 %1602
        %1604 = vrot.lane.b32.xlu0 %v1585, 32
        %v1605 = vpop.permute.xlu0 %1604
        %1606 = vrot.lane.b32.xlu0 %v1586, 32
        %v1607 = vpop.permute.xlu0 %1606
        %1608 = vrot.lane.b32.xlu0 %v1587, 32
        %v1609 = vpop.permute.xlu0 %1608
        %1610 = vrot.lane.b32.xlu0 %v1588, 32
        %v1611 = vpop.permute.xlu0 %1610
        %1612 = vrot.lane.b32.xlu0 %v1589, 32
        %v1613 = vpop.permute.xlu0 %1612
        %v1622 = vsel %vm1538, %v1518, %v1599
        %v1623 = vsel %vm1539, %v1519, %v1601
        %v1624 = vsel %vm1540, %v1520, %v1603
        %v1625 = vsel %vm1541, %v1521, %v1605
        %v1626 = vsel %vm1542, %v1522, %v1607
        %v1627 = vsel %vm1543, %v1523, %v1609
        %v1628 = vsel %vm1544, %v1524, %v1611
        %v1629 = vsel %vm1545, %v1525, %v1613
        %vm1630 = vcmp.ge.f32.partialorder %v1530, 0.0
        %vm1631 = vcmp.ge.f32.partialorder %v1531, 0.0
        %vm1632 = vcmp.ge.f32.partialorder %v1532, 0.0
        %vm1633 = vcmp.ge.f32.partialorder %v1533, 0.0
        %vm1634 = vcmp.ge.f32.partialorder %v1534, 0.0
        %vm1635 = vcmp.ge.f32.partialorder %v1535, 0.0
        %vm1636 = vcmp.ge.f32.partialorder %v1536, 0.0
        %vm1637 = vcmp.ge.f32.partialorder %v1537, 0.0
        %1646 = vrot.lane.b32.xlu0 %v1530, 96
        %v1647 = vpop.permute.xlu0 %1646
        %1648 = vrot.lane.b32.xlu0 %v1531, 96
        %v1649 = vpop.permute.xlu0 %1648
        %1650 = vrot.lane.b32.xlu0 %v1532, 96
        %v1651 = vpop.permute.xlu0 %1650
        %1652 = vrot.lane.b32.xlu0 %v1533, 96
        %v1653 = vpop.permute.xlu0 %1652
        %1654 = vrot.lane.b32.xlu0 %v1534, 96
        %v1655 = vpop.permute.xlu0 %1654
        %1656 = vrot.lane.b32.xlu0 %v1535, 96
        %v1657 = vpop.permute.xlu0 %1656
        %1658 = vrot.lane.b32.xlu0 %v1536, 96
        %v1659 = vpop.permute.xlu0 %1658
        %1660 = vrot.lane.b32.xlu0 %v1537, 96
        %v1661 = vpop.permute.xlu0 %1660
        %v1670 = vmul.f32 %v1549, %v1647
        %v1671 = vmul.f32 %v1549, %v1649
        %v1672 = vmul.f32 %v1549, %v1651
        %v1673 = vmul.f32 %v1549, %v1653
        %v1674 = vmul.f32 %v1549, %v1655
        %v1675 = vmul.f32 %v1549, %v1657
        %v1676 = vmul.f32 %v1549, %v1659
        %v1677 = vmul.f32 %v1549, %v1661
        %1686 = vrot.lane.b32.xlu0 %v1670, 32
        %v1687 = vpop.permute.xlu0 %1686
        %1688 = vrot.lane.b32.xlu0 %v1671, 32
        %v1689 = vpop.permute.xlu0 %1688
        %1690 = vrot.lane.b32.xlu0 %v1672, 32
        %v1691 = vpop.permute.xlu0 %1690
        %1692 = vrot.lane.b32.xlu0 %v1673, 32
        %v1693 = vpop.permute.xlu0 %1692
        %1694 = vrot.lane.b32.xlu0 %v1674, 32
        %v1695 = vpop.permute.xlu0 %1694
        %1696 = vrot.lane.b32.xlu0 %v1675, 32
        %v1697 = vpop.permute.xlu0 %1696
        %1698 = vrot.lane.b32.xlu0 %v1676, 32
        %v1699 = vpop.permute.xlu0 %1698
        %1700 = vrot.lane.b32.xlu0 %v1677, 32
        %v1701 = vpop.permute.xlu0 %1700
        %v1710 = vsel %vm1630, %v1530, %v1687
        %v1711 = vsel %vm1631, %v1531, %v1689
        %v1712 = vsel %vm1632, %v1532, %v1691
        %v1713 = vsel %vm1633, %v1533, %v1693
        %v1714 = vsel %vm1634, %v1534, %v1695
        %v1715 = vsel %vm1635, %v1535, %v1697
        %v1716 = vsel %vm1636, %v1536, %v1699
        %v1717 = vsel %vm1637, %v1537, %v1701
        %v1718 = vld [vmem:[%s7] sm:$0xf]
        %v1719 = vld [vmem:[%s7 + $0x4] sm:$0xf]
        %v1720 = vld [vmem:[%s7 + $0x8] sm:$0xf]
        %v1721 = vld [vmem:[%s7 + $0xc] sm:$0xf]
        %v1722 = vld [vmem:[%s7 + $0x10] sm:$0xf]
        %v1723 = vld [vmem:[%s7 + $0x14] sm:$0xf]
        %v1724 = vld [vmem:[%s7 + $0x18] sm:$0xf]
        %v1725 = vld [vmem:[%s7 + $0x1c] sm:$0xf]
        %v1726 = vld [vmem:[%s8] sm:$0xf]
        %v1727 = vld [vmem:[%s8 + $0x4] sm:$0xf]
        %v1728 = vld [vmem:[%s9] sm:$0x3]
        %v1729 = vpack.c.bf16 %v1623, %v1622
        %v1730 = vpack.c.bf16 %v1625, %v1624
        %v1731 = vpack.c.bf16 %v1627, %v1626
        %v1732 = vpack.c.bf16 %v1629, %v1628
        %v1733 = vpack.c.bf16 %v1711, %v1710
        %v1734 = vpack.c.bf16 %v1713, %v1712
        %v1735 = vpack.c.bf16 %v1715, %v1714
        %v1736 = vpack.c.bf16 %v1717, %v1716
        %1745 = vrot.lane.b32.xlu0 %v1729, 96
        %v1746 = vpop.permute.xlu0 %1745
        %1747 = vrot.lane.b32.xlu0 %v1730, 96
        %v1748 = vpop.permute.xlu0 %1747
        %1749 = vrot.lane.b32.xlu0 %v1731, 96
        %v1750 = vpop.permute.xlu0 %1749
        %1751 = vrot.lane.b32.xlu0 %v1732, 96
        %v1752 = vpop.permute.xlu0 %1751
        %1753 = vrot.lane.b32.xlu0 %v1733, 96
        %v1754 = vpop.permute.xlu0 %1753
        %1755 = vrot.lane.b32.xlu0 %v1734, 96
        %v1756 = vpop.permute.xlu0 %1755
        %1757 = vrot.lane.b32.xlu0 %v1735, 96
        %v1758 = vpop.permute.xlu0 %1757
        %1759 = vrot.lane.b32.xlu0 %v1736, 96
        %v1760 = vpop.permute.xlu0 %1759
        %v1765 = vunpack.c.l.b16 %v1722
        %v1766 = vunpack.c.l.b16 %v1723
        %v1767 = vunpack.c.l.b16 %v1724
        %v1768 = vunpack.c.l.b16 %v1725
        %v1769 = vpack.c.b16 %v1766, %v1765
        %v1770 = vpack.c.b16 %v1768, %v1767
        %v1774 = vsel %vm515, %v1746, 0
        %v1777 = vsel %vm515, %v1748, 0
        %v1780 = vsel %vm515, %v1750, 0
        %v1783 = vsel %vm515, %v1752, 0
        %v1786 = vsel %vm515, %v1754, 0
        %v1789 = vsel %vm515, %v1756, 0
        %v1792 = vsel %vm515, %v1758, 0
        %v1795 = vsel %vm515, %v1760, 0
        %1797 = vmatprep.subr.bf16.mxu0 0
        %1798 = vmatpush1.bf16.msra.mxu0 0
        %1799 = vmatprep.subr.bf16.mxu0 0
        %1800 = vmatpush1.bf16.msra.mxu0 0
        %1801 = vmatprep.subr.bf16.mxu0 0
        %1802 = vmatpush1.bf16.msra.mxu0 0
        %1803 = vmatprep.subr.bf16.mxu0 0
        %1804 = vmatpush1.bf16.msra.mxu0 0
        %1805 = vmatprep.subr.bf16.mxu0 0
        %1806 = vmatpush1.bf16.msra.mxu0 0
        %1807 = vmatprep.subr.bf16.mxu0 0
        %1808 = vmatpush1.bf16.msra.mxu0 0
        %1809 = vmatprep.subr.bf16.mxu0 0
        %1810 = vmatpush1.bf16.msra.mxu0 %v1770
        %1811 = vmatprep.subr.bf16.mxu0 0
        %1812 = vmatpush1.bf16.msra.mxu0 %v1769
        %1813 = vmatprep.subr.bf16.mxu0 0
        %1814 = vmatpush2.bf16.msra.mxu0 0
        %1815 = vmatprep.subr.bf16.mxu0 0
        %1816 = vmatpush2.bf16.msra.mxu0 0
        %1817 = vmatprep.subr.bf16.mxu0 0
        %1818 = vmatpush2.bf16.msra.mxu0 0
        %1819 = vmatprep.subr.bf16.mxu0 0
        %1820 = vmatpush2.bf16.msra.mxu0 0
        %1821 = vmatprep.subr.bf16.mxu0 0
        %1822 = vmatpush2.bf16.msra.mxu0 0
        %1823 = vmatprep.subr.bf16.mxu0 0
        %1824 = vmatpush2.bf16.msra.mxu0 0
        %1825 = vmatprep.subr.bf16.mxu0 0
        %1826 = vmatpush2.bf16.msra.mxu0 0
        %1827 = vmatprep.subr.bf16.mxu0 0
        %1828 = vmatpush2.bf16.msra.mxu0 0
        %1829 = vmatprep.mubr.bf16.mxu0 0
        %1830 = vmatmul.mubr.bf16.gmra.mxu0 %v1774
        %v1831 = vpop.f32.mrf.mxu0
        %v1832 = vadd.f32 0.0, %v1831
        %v1833 = vpop.f32.mrf.mxu0
        %v1834 = vpop.f32.mrf.mxu0
        %v1835 = vadd.f32 0.0, %v1834
        %v1836 = vpop.f32.mrf.mxu0
        %1837 = vmatprep.mubr.bf16.mxu0 0
        %1838 = vmatmul.mubr.bf16.gmra.mxu0 %v1777
        %v1839 = vpop.f32.mrf.mxu0
        %v1840 = vadd.f32 0.0, %v1839
        %v1841 = vpop.f32.mrf.mxu0
        %v1842 = vpop.f32.mrf.mxu0
        %v1843 = vadd.f32 0.0, %v1842
        %v1844 = vpop.f32.mrf.mxu0
        %1845 = vmatprep.mubr.bf16.mxu0 0
        %1846 = vmatmul.mubr.bf16.gmra.mxu0 %v1780
        %v1847 = vpop.f32.mrf.mxu0
        %v1848 = vadd.f32 0.0, %v1847
        %v1849 = vpop.f32.mrf.mxu0
        %v1850 = vpop.f32.mrf.mxu0
        %v1851 = vadd.f32 0.0, %v1850
        %v1852 = vpop.f32.mrf.mxu0
        %1853 = vmatprep.mubr.bf16.mxu0 0
        %1854 = vmatmul.mubr.bf16.gmra.mxu0 %v1783
        %v1855 = vpop.f32.mrf.mxu0
        %v1856 = vadd.f32 0.0, %v1855
        %v1857 = vpop.f32.mrf.mxu0
        %v1858 = vpop.f32.mrf.mxu0
        %v1859 = vadd.f32 0.0, %v1858
        %v1860 = vpop.f32.mrf.mxu0
        %1861 = vmatprep.mubr.bf16.mxu0 0
        %1862 = vmatmul.mubr.bf16.gmra.mxu0 %v1786
        %v1863 = vpop.f32.mrf.mxu0
        %v1864 = vadd.f32 0.0, %v1863
        %v1865 = vpop.f32.mrf.mxu0
        %v1866 = vpop.f32.mrf.mxu0
        %v1867 = vadd.f32 0.0, %v1866
        %v1868 = vpop.f32.mrf.mxu0
        %1869 = vmatprep.mubr.bf16.mxu0 0
        %1870 = vmatmul.mubr.bf16.gmra.mxu0 %v1789
        %v1871 = vpop.f32.mrf.mxu0
        %v1872 = vadd.f32 0.0, %v1871
        %v1873 = vpop.f32.mrf.mxu0
        %v1874 = vpop.f32.mrf.mxu0
        %v1875 = vadd.f32 0.0, %v1874
        %v1876 = vpop.f32.mrf.mxu0
        %1877 = vmatprep.mubr.bf16.mxu0 0
        %1878 = vmatmul.mubr.bf16.gmra.mxu0 %v1792
        %v1879 = vpop.f32.mrf.mxu0
        %v1880 = vadd.f32 0.0, %v1879
        %v1881 = vpop.f32.mrf.mxu0
        %v1882 = vpop.f32.mrf.mxu0
        %v1883 = vadd.f32 0.0, %v1882
        %v1884 = vpop.f32.mrf.mxu0
        %1885 = vmatprep.mubr.bf16.mxu0 0
        %1886 = vmatmul.mubr.bf16.gmra.mxu0 %v1795
        %v1887 = vpop.f32.mrf.mxu0
        %v1888 = vadd.f32 0.0, %v1887
        %v1889 = vpop.f32.mrf.mxu0
        %v1890 = vpop.f32.mrf.mxu0
        %v1891 = vadd.f32 0.0, %v1890
        %v1892 = vpop.f32.mrf.mxu0
        %1893 = vdwg.mxu0
        %v1898 = vunpack.c.l.b16 %v1718
        %v1899 = vunpack.c.l.b16 %v1719
        %v1900 = vunpack.c.l.b16 %v1720
        %v1901 = vunpack.c.l.b16 %v1721
        %v1902 = vpack.c.b16 %v1899, %v1898
        %v1903 = vpack.c.b16 %v1901, %v1900
        %1906 = vmatprep.subr.bf16.mxu0 0
        %1907 = vmatpush1.bf16.msra.mxu0 0
        %1908 = vmatprep.subr.bf16.mxu0 0
        %1909 = vmatpush1.bf16.msra.mxu0 0
        %1910 = vmatprep.subr.bf16.mxu0 0
        %1911 = vmatpush1.bf16.msra.mxu0 0
        %1912 = vmatprep.subr.bf16.mxu0 0
        %1913 = vmatpush1.bf16.msra.mxu0 0
        %1914 = vmatprep.subr.bf16.mxu0 0
        %1915 = vmatpush1.bf16.msra.mxu0 0
        %1916 = vmatprep.subr.bf16.mxu0 0
        %1917 = vmatpush1.bf16.msra.mxu0 0
        %1918 = vmatprep.subr.bf16.mxu0 0
        %1919 = vmatpush1.bf16.msra.mxu0 %v1903
        %1920 = vmatprep.subr.bf16.mxu0 0
        %1921 = vmatpush1.bf16.msra.mxu0 %v1902
        %1922 = vmatprep.subr.bf16.mxu0 0
        %1923 = vmatpush2.bf16.msra.mxu0 0
        %1924 = vmatprep.subr.bf16.mxu0 0
        %1925 = vmatpush2.bf16.msra.mxu0 0
        %1926 = vmatprep.subr.bf16.mxu0 0
        %1927 = vmatpush2.bf16.msra.mxu0 0
        %1928 = vmatprep.subr.bf16.mxu0 0
        %1929 = vmatpush2.bf16.msra.mxu0 0
        %1930 = vmatprep.subr.bf16.mxu0 0
        %1931 = vmatpush2.bf16.msra.mxu0 0
        %1932 = vmatprep.subr.bf16.mxu0 0
        %1933 = vmatpush2.bf16.msra.mxu0 0
        %1934 = vmatprep.subr.bf16.mxu0 0
        %1935 = vmatpush2.bf16.msra.mxu0 0
        %1936 = vmatprep.subr.bf16.mxu0 0
        %1937 = vmatpush2.bf16.msra.mxu0 0
        %1938 = vmatprep.mubr.bf16.mxu0 0
        %1939 = vmatmul.mubr.bf16.gmra.mxu0 %v1774
        %v1940 = vpop.f32.mrf.mxu0
        %v1941 = vadd.f32 %v1864, %v1940
        %v1942 = vpop.f32.mrf.mxu0
        %v1943 = vpop.f32.mrf.mxu0
        %v1944 = vadd.f32 %v1867, %v1943
        %v1945 = vpop.f32.mrf.mxu0
        %1946 = vmatprep.mubr.bf16.mxu0 0
        %1947 = vmatmul.mubr.bf16.gmra.mxu0 %v1777
        %v1948 = vpop.f32.mrf.mxu0
        %v1949 = vadd.f32 %v1872, %v1948
        %v1950 = vpop.f32.mrf.mxu0
        %v1951 = vpop.f32.mrf.mxu0
        %v1952 = vadd.f32 %v1875, %v1951
        %v1953 = vpop.f32.mrf.mxu0
        %1954 = vmatprep.mubr.bf16.mxu0 0
        %1955 = vmatmul.mubr.bf16.gmra.mxu0 %v1780
        %v1956 = vpop.f32.mrf.mxu0
        %v1957 = vadd.f32 %v1880, %v1956
        %v1958 = vpop.f32.mrf.mxu0
        %v1959 = vpop.f32.mrf.mxu0
        %v1960 = vadd.f32 %v1883, %v1959
        %v1961 = vpop.f32.mrf.mxu0
        %1962 = vmatprep.mubr.bf16.mxu0 0
        %1963 = vmatmul.mubr.bf16.gmra.mxu0 %v1783
        %v1964 = vpop.f32.mrf.mxu0
        %v1965 = vadd.f32 %v1888, %v1964
        %v1966 = vpop.f32.mrf.mxu0
        %v1967 = vpop.f32.mrf.mxu0
        %v1968 = vadd.f32 %v1891, %v1967
        %v1969 = vpop.f32.mrf.mxu0
        %1970 = vmatprep.mubr.bf16.mxu0 0
        %1971 = vmatmul.mubr.bf16.gmra.mxu0 %v1786
        %v1972 = vpop.f32.mrf.mxu0
        %v1973 = vadd.f32 %v1832, %v1972
        %v1974 = vpop.f32.mrf.mxu0
        %v1975 = vpop.f32.mrf.mxu0
        %v1976 = vadd.f32 %v1835, %v1975
        %v1977 = vpop.f32.mrf.mxu0
        %1978 = vmatprep.mubr.bf16.mxu0 0
        %1979 = vmatmul.mubr.bf16.gmra.mxu0 %v1789
        %v1980 = vpop.f32.mrf.mxu0
        %v1981 = vadd.f32 %v1840, %v1980
        %v1982 = vpop.f32.mrf.mxu0
        %v1983 = vpop.f32.mrf.mxu0
        %v1984 = vadd.f32 %v1843, %v1983
        %v1985 = vpop.f32.mrf.mxu0
        %1986 = vmatprep.mubr.bf16.mxu0 0
        %1987 = vmatmul.mubr.bf16.gmra.mxu0 %v1792
        %v1988 = vpop.f32.mrf.mxu0
        %v1989 = vadd.f32 %v1848, %v1988
        %v1990 = vpop.f32.mrf.mxu0
        %v1991 = vpop.f32.mrf.mxu0
        %v1992 = vadd.f32 %v1851, %v1991
        %v1993 = vpop.f32.mrf.mxu0
        %1994 = vmatprep.mubr.bf16.mxu0 0
        %1995 = vmatmul.mubr.bf16.gmra.mxu0 %v1795
        %v1996 = vpop.f32.mrf.mxu0
        %v1997 = vadd.f32 %v1856, %v1996
        %v1998 = vpop.f32.mrf.mxu0
        %v1999 = vpop.f32.mrf.mxu0
        %v2000 = vadd.f32 %v1859, %v1999
        %v2001 = vpop.f32.mrf.mxu0
        %2002 = vdwg.mxu0
        %vm2003 = vcmask 130048
        %v2004 = vsel %vm2003, %v1941, -inf
        %v2005 = vrot.slane %v2004, 4
        %v2006 = vmax.f32 %v2004, %v2005
        %v2007 = vrot.slane %v2006, 2
        %v2008 = vmax.f32 %v2006, %v2007
        %v2009 = vrot.slane %v2008, 1
        %v2010 = vmax.f32 %v2008, %v2009
        %v2011 = vsel %vm2003, %v1944, -inf
        %v2012 = vrot.slane %v2011, 4
        %v2013 = vmax.f32 %v2011, %v2012
        %v2014 = vrot.slane %v2013, 2
        %v2015 = vmax.f32 %v2013, %v2014
        %v2016 = vrot.slane %v2015, 1
        %v2017 = vmax.f32 %v2015, %v2016
        %v2018 = vsel %vm2003, %v1949, -inf
        %v2019 = vrot.slane %v2018, 4
        %v2020 = vmax.f32 %v2018, %v2019
        %v2021 = vrot.slane %v2020, 2
        %v2022 = vmax.f32 %v2020, %v2021
        %v2023 = vrot.slane %v2022, 1
        %v2024 = vmax.f32 %v2022, %v2023
        %v2025 = vsel %vm2003, %v1952, -inf
        %v2026 = vrot.slane %v2025, 4
        %v2027 = vmax.f32 %v2025, %v2026
        %v2028 = vrot.slane %v2027, 2
        %v2029 = vmax.f32 %v2027, %v2028
        %v2030 = vrot.slane %v2029, 1
        %v2031 = vmax.f32 %v2029, %v2030
        %v2032 = vsel %vm2003, %v1957, -inf
        %v2033 = vrot.slane %v2032, 4
        %v2034 = vmax.f32 %v2032, %v2033
        %v2035 = vrot.slane %v2034, 2
        %v2036 = vmax.f32 %v2034, %v2035
        %v2037 = vrot.slane %v2036, 1
        %v2038 = vmax.f32 %v2036, %v2037
        %v2039 = vsel %vm2003, %v1960, -inf
        %v2040 = vrot.slane %v2039, 4
        %v2041 = vmax.f32 %v2039, %v2040
        %v2042 = vrot.slane %v2041, 2
        %v2043 = vmax.f32 %v2041, %v2042
        %v2044 = vrot.slane %v2043, 1
        %v2045 = vmax.f32 %v2043, %v2044
        %v2046 = vsel %vm2003, %v1965, -inf
        %v2047 = vrot.slane %v2046, 4
        %v2048 = vmax.f32 %v2046, %v2047
        %v2049 = vrot.slane %v2048, 2
        %v2050 = vmax.f32 %v2048, %v2049
        %v2051 = vrot.slane %v2050, 1
        %v2052 = vmax.f32 %v2050, %v2051
        %v2053 = vsel %vm2003, %v1968, -inf
        %v2054 = vrot.slane %v2053, 4
        %v2055 = vmax.f32 %v2053, %v2054
        %v2056 = vrot.slane %v2055, 2
        %v2057 = vmax.f32 %v2055, %v2056
        %v2058 = vrot.slane %v2057, 1
        %v2059 = vmax.f32 %v2057, %v2058
        %v2060 = vsel %vm2003, %v1973, -inf
        %v2061 = vsel %vm2003, %v1976, -inf
        %v2062 = vsel %vm2003, %v1981, -inf
        %v2063 = vsel %vm2003, %v1984, -inf
        %v2064 = vsel %vm2003, %v1989, -inf
        %v2065 = vmax.f32 %v2060, %v2064
        %v2066 = vsel %vm2003, %v1992, -inf
        %v2067 = vmax.f32 %v2061, %v2066
        %v2068 = vsel %vm2003, %v1997, -inf
        %v2069 = vmax.f32 %v2062, %v2068
        %v2070 = vsel %vm2003, %v2000, -inf
        %v2071 = vmax.f32 %v2063, %v2070
        %v2072 = vmax.f32 %v2065, %v2067
        %v2073 = vmax.f32 %v2069, %v2071
        %v2074 = vmax.f32 %v2072, %v2073
        %v2083 = vsel %vm595, %v2017, %v2010
        %v2084 = vsel %vm597, %v2024, %v2083
        %v2085 = vsel %vm599, %v2031, %v2084
        %v2086 = vsel %vm601, %v2038, %v2085
        %v2087 = vsel %vm603, %v2045, %v2086
        %v2088 = vsel %vm605, %v2052, %v2087
        %v2089 = vsel %vm607, %v2059, %v2088
        %v2091 = vpack.c.bf16 %v2074, %v2089
        %v2092 = vlaneseq
        %v2093 = vshrl.u32 %v2092, 7
        %v2094 = vsub.s32 0, %v2093
        %v2095 = vrot.slane %v1728, %v2094
        %v2098 = vunpack.c.l.b16 %v1726
        %v2099 = vunpack.c.l.b16 %v1727
        %v2100 = vpack.c.b16 %v2099, %v2098
        %v2103 = vsel %vm2003, %v2091, 0
        %2105 = vmatprep.subr.bf16.mxu0 0
        %2106 = vmatpush1.bf16.msra.mxu0 0
        %2107 = vmatprep.subr.bf16.mxu0 0
        %2108 = vmatpush1.bf16.msra.mxu0 0
        %2109 = vmatprep.subr.bf16.mxu0 0
        %2110 = vmatpush1.bf16.msra.mxu0 0
        %2111 = vmatprep.subr.bf16.mxu0 0
        %2112 = vmatpush1.bf16.msra.mxu0 0
        %2113 = vmatprep.subr.bf16.mxu0 0
        %2114 = vmatpush1.bf16.msra.mxu0 0
        %2115 = vmatprep.subr.bf16.mxu0 0
        %2116 = vmatpush1.bf16.msra.mxu0 0
        %2117 = vmatprep.subr.bf16.mxu0 0
        %2118 = vmatpush1.bf16.msra.mxu0 0
        %2119 = vmatprep.subr.bf16.mxu0 0
        %2120 = vmatpush1.bf16.msra.mxu0 %v2100
        %2121 = vmatprep.subr.bf16.mxu0 0
        %2122 = vmatpush2.bf16.msra.mxu0 0
        %2123 = vmatprep.subr.bf16.mxu0 0
        %2124 = vmatpush2.bf16.msra.mxu0 0
        %2125 = vmatprep.subr.bf16.mxu0 0
        %2126 = vmatpush2.bf16.msra.mxu0 0
        %2127 = vmatprep.subr.bf16.mxu0 0
        %2128 = vmatpush2.bf16.msra.mxu0 0
        %2129 = vmatprep.subr.bf16.mxu0 0
        %2130 = vmatpush2.bf16.msra.mxu0 0
        %2131 = vmatprep.subr.bf16.mxu0 0
        %2132 = vmatpush2.bf16.msra.mxu0 0
        %2133 = vmatprep.subr.bf16.mxu0 0
        %2134 = vmatpush2.bf16.msra.mxu0 0
        %2135 = vmatprep.subr.bf16.mxu0 0
        %2136 = vmatpush2.bf16.msra.mxu0 0
        %2137 = vmatprep.mubr.bf16.mxu0 0
        %2138 = vmatmul.mubr.bf16.gmra.mxu0 %v2103
        %v2139 = vpop.f32.mrf.mxu0
        %v2140 = vadd.f32 %v2095, %v2139
        %v2141 = vpop.f32.mrf.mxu0
        %v2142 = vpop.f32.mrf.mxu0
        %v2143 = vadd.f32 %v2095, %v2142
        %v2144 = vpop.f32.mrf.mxu0
        %2145 = vdwg.mxu0
        %v2147 = vcombine.high %v2140, %v2140
        %v2149 = vunpack.c.l.s4 1966171168
        %v2150 = vunpack.c.0.s8 %v2149
        %v2151 = vlaneseq
        %v2152 = vshrl.u32 %v2151, 7
        %v2153 = vsub.s32 %v2150, %v2152
        %v2154 = vrot.slane %v2140, %v2153
        %v2156 = vunpack.c.l.s4 1966171168
        %v2157 = vunpack.c.0.s8 %v2156
        %v2158 = vlaneseq
        %v2159 = vshrl.u32 %v2158, 7
        %v2160 = vsub.s32 %v2157, %v2159
        %v2161 = vrot.slane %v2147, %v2160
        %v2162 = vcombine.high %v2154, %v2154
        %v2163 = vcombine.high %v2161, %v2161
        %v2165 = vunpack.c.l.s4 1966171168
        %v2166 = vunpack.c.0.s8 %v2165
        %v2167 = vlaneseq
        %v2168 = vshrl.u32 %v2167, 7
        %v2169 = vsub.s32 %v2166, %v2168
        %v2170 = vrot.slane %v2154, %v2169
        %v2172 = vunpack.c.l.s4 1966171168
        %v2173 = vunpack.c.0.s8 %v2172
        %v2174 = vlaneseq
        %v2175 = vshrl.u32 %v2174, 7
        %v2176 = vsub.s32 %v2173, %v2175
        %v2177 = vrot.slane %v2161, %v2176
        %v2179 = vunpack.c.l.s4 1966171168
        %v2180 = vunpack.c.0.s8 %v2179
        %v2181 = vlaneseq
        %v2182 = vshrl.u32 %v2181, 7
        %v2183 = vsub.s32 %v2180, %v2182
        %v2184 = vrot.slane %v2162, %v2183
        %v2186 = vunpack.c.l.s4 1966171168
        %v2187 = vunpack.c.0.s8 %v2186
        %v2188 = vlaneseq
        %v2189 = vshrl.u32 %v2188, 7
        %v2190 = vsub.s32 %v2187, %v2189
        %v2191 = vrot.slane %v2163, %v2190
        %v2192 = vcombine.high %v2170, %v2170
        %v2193 = vcombine.high %v2177, %v2177
        %v2194 = vcombine.high %v2184, %v2184
        %v2195 = vcombine.high %v2191, %v2191
        %v2196 = vlaneseq
        %v2197 = vshrl.u32 %v2196, 7
        %v2198 = vsub.s32 0, %v2197
        %v2199 = vrot.slane %v2170, %v2198
        %v2200 = vlaneseq
        %v2201 = vshrl.u32 %v2200, 7
        %v2202 = vsub.s32 0, %v2201
        %v2203 = vrot.slane %v2184, %v2202
        %v2204 = vlaneseq
        %v2205 = vshrl.u32 %v2204, 7
        %v2206 = vsub.s32 0, %v2205
        %v2207 = vrot.slane %v2192, %v2206
        %v2208 = vlaneseq
        %v2209 = vshrl.u32 %v2208, 7
        %v2210 = vsub.s32 0, %v2209
        %v2211 = vrot.slane %v2194, %v2210
        %v2212 = vlaneseq
        %v2213 = vshrl.u32 %v2212, 7
        %v2214 = vsub.s32 0, %v2213
        %v2215 = vrot.slane %v2177, %v2214
        %v2216 = vlaneseq
        %v2217 = vshrl.u32 %v2216, 7
        %v2218 = vsub.s32 0, %v2217
        %v2219 = vrot.slane %v2191, %v2218
        %v2220 = vlaneseq
        %v2221 = vshrl.u32 %v2220, 7
        %v2222 = vsub.s32 0, %v2221
        %v2223 = vrot.slane %v2193, %v2222
        %v2224 = vlaneseq
        %v2225 = vshrl.u32 %v2224, 7
        %v2226 = vsub.s32 0, %v2225
        %v2227 = vrot.slane %v2195, %v2226
        %2228 = vrot.lane.b32.xlu0 %v2199, 16
        %v2229 = vpop.permute.xlu0 %2228
        %2230 = vrot.lane.b32.xlu0 %v2203, 16
        %v2231 = vpop.permute.xlu0 %2230
        %2232 = vrot.lane.b32.xlu0 %v2207, 16
        %v2233 = vpop.permute.xlu0 %2232
        %2234 = vrot.lane.b32.xlu0 %v2211, 16
        %v2235 = vpop.permute.xlu0 %2234
        %2236 = vrot.lane.b32.xlu0 %v2215, 16
        %v2237 = vpop.permute.xlu0 %2236
        %2238 = vrot.lane.b32.xlu0 %v2219, 16
        %v2239 = vpop.permute.xlu0 %2238
        %2240 = vrot.lane.b32.xlu0 %v2223, 16
        %v2241 = vpop.permute.xlu0 %2240
        %2242 = vrot.lane.b32.xlu0 %v2227, 16
        %v2243 = vpop.permute.xlu0 %2242
        %v2252 = vadd.f32 %v1941, %v2229
        %v2253 = vadd.f32 %v1944, %v2231
        %v2254 = vadd.f32 %v1949, %v2233
        %v2255 = vadd.f32 %v1952, %v2235
        %v2256 = vadd.f32 %v1957, %v2237
        %v2257 = vadd.f32 %v1960, %v2239
        %v2258 = vadd.f32 %v1965, %v2241
        %v2259 = vadd.f32 %v1968, %v2243
        %2261 = vrot.lane.b32.xlu0 %v2143, 16
        %v2262 = vpop.permute.xlu0 %2261
        %v2264 = vadd.f32 %v1973, %v2262
        %v2265 = vadd.f32 %v1976, %v2262
        %v2266 = vadd.f32 %v1981, %v2262
        %v2267 = vadd.f32 %v1984, %v2262
        %v2268 = vadd.f32 %v1989, %v2262
        %v2269 = vadd.f32 %v1992, %v2262
        %v2270 = vadd.f32 %v1997, %v2262
        %v2271 = vadd.f32 %v2000, %v2262
        %vm2272 = vcmp.ge.f32.partialorder %v2252, 0.0
        %vm2273 = vcmp.ge.f32.partialorder %v2253, 0.0
        %vm2274 = vcmp.ge.f32.partialorder %v2254, 0.0
        %vm2275 = vcmp.ge.f32.partialorder %v2255, 0.0
        %vm2276 = vcmp.ge.f32.partialorder %v2256, 0.0
        %vm2277 = vcmp.ge.f32.partialorder %v2257, 0.0
        %vm2278 = vcmp.ge.f32.partialorder %v2258, 0.0
        %vm2279 = vcmp.ge.f32.partialorder %v2259, 0.0
        %v2280 = vlaneseq
        %v2281 = vshrl.u32 %v2280, 7
        %v2282 = vsub.s32 1, %v2281
        %v2283 = vrot.slane %v1728, %v2282
        %2292 = vrot.lane.b32.xlu0 %v2252, 112
        %v2293 = vpop.permute.xlu0 %2292
        %2294 = vrot.lane.b32.xlu0 %v2253, 112
        %v2295 = vpop.permute.xlu0 %2294
        %2296 = vrot.lane.b32.xlu0 %v2254, 112
        %v2297 = vpop.permute.xlu0 %2296
        %2298 = vrot.lane.b32.xlu0 %v2255, 112
        %v2299 = vpop.permute.xlu0 %2298
        %2300 = vrot.lane.b32.xlu0 %v2256, 112
        %v2301 = vpop.permute.xlu0 %2300
        %2302 = vrot.lane.b32.xlu0 %v2257, 112
        %v2303 = vpop.permute.xlu0 %2302
        %2304 = vrot.lane.b32.xlu0 %v2258, 112
        %v2305 = vpop.permute.xlu0 %2304
        %2306 = vrot.lane.b32.xlu0 %v2259, 112
        %v2307 = vpop.permute.xlu0 %2306
        %v2316 = vmul.f32 %v2283, %v2293
        %v2317 = vmul.f32 %v2283, %v2295
        %v2318 = vmul.f32 %v2283, %v2297
        %v2319 = vmul.f32 %v2283, %v2299
        %v2320 = vmul.f32 %v2283, %v2301
        %v2321 = vmul.f32 %v2283, %v2303
        %v2322 = vmul.f32 %v2283, %v2305
        %v2323 = vmul.f32 %v2283, %v2307
        %2332 = vrot.lane.b32.xlu0 %v2316, 16
        %v2333 = vpop.permute.xlu0 %2332
        %2334 = vrot.lane.b32.xlu0 %v2317, 16
        %v2335 = vpop.permute.xlu0 %2334
        %2336 = vrot.lane.b32.xlu0 %v2318, 16
        %v2337 = vpop.permute.xlu0 %2336
        %2338 = vrot.lane.b32.xlu0 %v2319, 16
        %v2339 = vpop.permute.xlu0 %2338
        %2340 = vrot.lane.b32.xlu0 %v2320, 16
        %v2341 = vpop.permute.xlu0 %2340
        %2342 = vrot.lane.b32.xlu0 %v2321, 16
        %v2343 = vpop.permute.xlu0 %2342
        %2344 = vrot.lane.b32.xlu0 %v2322, 16
        %v2345 = vpop.permute.xlu0 %2344
        %2346 = vrot.lane.b32.xlu0 %v2323, 16
        %v2347 = vpop.permute.xlu0 %2346
        %v2356 = vsel %vm2272, %v2252, %v2333
        %v2357 = vsel %vm2273, %v2253, %v2335
        %v2358 = vsel %vm2274, %v2254, %v2337
        %v2359 = vsel %vm2275, %v2255, %v2339
        %v2360 = vsel %vm2276, %v2256, %v2341
        %v2361 = vsel %vm2277, %v2257, %v2343
        %v2362 = vsel %vm2278, %v2258, %v2345
        %v2363 = vsel %vm2279, %v2259, %v2347
        %vm2364 = vcmp.ge.f32.partialorder %v2264, 0.0
        %vm2365 = vcmp.ge.f32.partialorder %v2265, 0.0
        %vm2366 = vcmp.ge.f32.partialorder %v2266, 0.0
        %vm2367 = vcmp.ge.f32.partialorder %v2267, 0.0
        %vm2368 = vcmp.ge.f32.partialorder %v2268, 0.0
        %vm2369 = vcmp.ge.f32.partialorder %v2269, 0.0
        %vm2370 = vcmp.ge.f32.partialorder %v2270, 0.0
        %vm2371 = vcmp.ge.f32.partialorder %v2271, 0.0
        %2380 = vrot.lane.b32.xlu0 %v2264, 112
        %v2381 = vpop.permute.xlu0 %2380
        %2382 = vrot.lane.b32.xlu0 %v2265, 112
        %v2383 = vpop.permute.xlu0 %2382
        %2384 = vrot.lane.b32.xlu0 %v2266, 112
        %v2385 = vpop.permute.xlu0 %2384
        %2386 = vrot.lane.b32.xlu0 %v2267, 112
        %v2387 = vpop.permute.xlu0 %2386
        %2388 = vrot.lane.b32.xlu0 %v2268, 112
        %v2389 = vpop.permute.xlu0 %2388
        %2390 = vrot.lane.b32.xlu0 %v2269, 112
        %v2391 = vpop.permute.xlu0 %2390
        %2392 = vrot.lane.b32.xlu0 %v2270, 112
        %v2393 = vpop.permute.xlu0 %2392
        %2394 = vrot.lane.b32.xlu0 %v2271, 112
        %v2395 = vpop.permute.xlu0 %2394
        %v2404 = vmul.f32 %v2283, %v2381
        %v2405 = vmul.f32 %v2283, %v2383
        %v2406 = vmul.f32 %v2283, %v2385
        %v2407 = vmul.f32 %v2283, %v2387
        %v2408 = vmul.f32 %v2283, %v2389
        %v2409 = vmul.f32 %v2283, %v2391
        %v2410 = vmul.f32 %v2283, %v2393
        %v2411 = vmul.f32 %v2283, %v2395
        %2420 = vrot.lane.b32.xlu0 %v2404, 16
        %v2421 = vpop.permute.xlu0 %2420
        %2422 = vrot.lane.b32.xlu0 %v2405, 16
        %v2423 = vpop.permute.xlu0 %2422
        %2424 = vrot.lane.b32.xlu0 %v2406, 16
        %v2425 = vpop.permute.xlu0 %2424
        %2426 = vrot.lane.b32.xlu0 %v2407, 16
        %v2427 = vpop.permute.xlu0 %2426
        %2428 = vrot.lane.b32.xlu0 %v2408, 16
        %v2429 = vpop.permute.xlu0 %2428
        %2430 = vrot.lane.b32.xlu0 %v2409, 16
        %v2431 = vpop.permute.xlu0 %2430
        %2432 = vrot.lane.b32.xlu0 %v2410, 16
        %v2433 = vpop.permute.xlu0 %2432
        %2434 = vrot.lane.b32.xlu0 %v2411, 16
        %v2435 = vpop.permute.xlu0 %2434
        %v2444 = vsel %vm2364, %v2264, %v2421
        %v2445 = vsel %vm2365, %v2265, %v2423
        %v2446 = vsel %vm2366, %v2266, %v2425
        %v2447 = vsel %vm2367, %v2267, %v2427
        %v2448 = vsel %vm2368, %v2268, %v2429
        %v2449 = vsel %vm2369, %v2269, %v2431
        %v2450 = vsel %vm2370, %v2270, %v2433
        %v2451 = vsel %vm2371, %v2271, %v2435
        %2468 = vrot.lane.b32.xlu0 %v2356, 112
        %v2469 = vpop.permute.xlu0 %2468
        %2470 = vrot.lane.b32.xlu0 %v2357, 112
        %v2471 = vpop.permute.xlu0 %2470
        %2472 = vrot.lane.b32.xlu0 %v2358, 112
        %v2473 = vpop.permute.xlu0 %2472
        %2474 = vrot.lane.b32.xlu0 %v2359, 112
        %v2475 = vpop.permute.xlu0 %2474
        %2476 = vrot.lane.b32.xlu0 %v2360, 112
        %v2477 = vpop.permute.xlu0 %2476
        %2478 = vrot.lane.b32.xlu0 %v2361, 112
        %v2479 = vpop.permute.xlu0 %2478
        %2480 = vrot.lane.b32.xlu0 %v2362, 112
        %v2481 = vpop.permute.xlu0 %2480
        %2482 = vrot.lane.b32.xlu0 %v2363, 112
        %v2483 = vpop.permute.xlu0 %2482
        %2484 = vrot.lane.b32.xlu0 %v2444, 112
        %v2485 = vpop.permute.xlu0 %2484
        %2486 = vrot.lane.b32.xlu0 %v2445, 112
        %v2487 = vpop.permute.xlu0 %2486
        %2488 = vrot.lane.b32.xlu0 %v2446, 112
        %v2489 = vpop.permute.xlu0 %2488
        %2490 = vrot.lane.b32.xlu0 %v2447, 112
        %v2491 = vpop.permute.xlu0 %2490
        %2492 = vrot.lane.b32.xlu0 %v2448, 112
        %v2493 = vpop.permute.xlu0 %2492
        %2494 = vrot.lane.b32.xlu0 %v2449, 112
        %v2495 = vpop.permute.xlu0 %2494
        %2496 = vrot.lane.b32.xlu0 %v2450, 112
        %v2497 = vpop.permute.xlu0 %2496
        %2498 = vrot.lane.b32.xlu0 %v2451, 112
        %v2499 = vpop.permute.xlu0 %2498
        %v2516 = vcombine.low %v2469, %v2473
        %v2517 = vcombine.high %v2469, %v2473
        %v2519 = vunpack.c.l.s4 1983009808
        %v2520 = vunpack.c.0.s8 %v2519
        %v2521 = vlaneseq
        %v2522 = vshrl.u32 %v2521, 7
        %v2523 = vsub.s32 %v2520, %v2522
        %v2524 = vrot.slane %v2516, %v2523
        %v2526 = vunpack.c.l.s4 1983009808
        %v2527 = vunpack.c.0.s8 %v2526
        %v2528 = vlaneseq
        %v2529 = vshrl.u32 %v2528, 7
        %v2530 = vsub.s32 %v2527, %v2529
        %v2531 = vrot.slane %v2517, %v2530
        %v2532 = vcombine.low %v2471, %v2475
        %v2533 = vcombine.high %v2471, %v2475
        %v2535 = vunpack.c.l.s4 1983009808
        %v2536 = vunpack.c.0.s8 %v2535
        %v2537 = vlaneseq
        %v2538 = vshrl.u32 %v2537, 7
        %v2539 = vsub.s32 %v2536, %v2538
        %v2540 = vrot.slane %v2532, %v2539
        %v2542 = vunpack.c.l.s4 1983009808
        %v2543 = vunpack.c.0.s8 %v2542
        %v2544 = vlaneseq
        %v2545 = vshrl.u32 %v2544, 7
        %v2546 = vsub.s32 %v2543, %v2545
        %v2547 = vrot.slane %v2533, %v2546
        %v2548 = vcombine.low %v2477, %v2481
        %v2549 = vcombine.high %v2477, %v2481
        %v2551 = vunpack.c.l.s4 1983009808
        %v2552 = vunpack.c.0.s8 %v2551
        %v2553 = vlaneseq
        %v2554 = vshrl.u32 %v2553, 7
        %v2555 = vsub.s32 %v2552, %v2554
        %v2556 = vrot.slane %v2548, %v2555
        %v2558 = vunpack.c.l.s4 1983009808
        %v2559 = vunpack.c.0.s8 %v2558
        %v2560 = vlaneseq
        %v2561 = vshrl.u32 %v2560, 7
        %v2562 = vsub.s32 %v2559, %v2561
        %v2563 = vrot.slane %v2549, %v2562
        %v2564 = vcombine.low %v2479, %v2483
        %v2565 = vcombine.high %v2479, %v2483
        %v2567 = vunpack.c.l.s4 1983009808
        %v2568 = vunpack.c.0.s8 %v2567
        %v2569 = vlaneseq
        %v2570 = vshrl.u32 %v2569, 7
        %v2571 = vsub.s32 %v2568, %v2570
        %v2572 = vrot.slane %v2564, %v2571
        %v2574 = vunpack.c.l.s4 1983009808
        %v2575 = vunpack.c.0.s8 %v2574
        %v2576 = vlaneseq
        %v2577 = vshrl.u32 %v2576, 7
        %v2578 = vsub.s32 %v2575, %v2577
        %v2579 = vrot.slane %v2565, %v2578
        %v2580 = vcombine.low %v2524, %v2540
        %v2581 = vcombine.high %v2524, %v2540
        %v2583 = vunpack.c.l.s4 1934713408
        %v2584 = vunpack.c.0.s8 %v2583
        %v2585 = vlaneseq
        %v2586 = vshrl.u32 %v2585, 7
        %v2587 = vsub.s32 %v2584, %v2586
        %v2588 = vrot.slane %v2580, %v2587
        %v2590 = vunpack.c.l.s4 1934713408
        %v2591 = vunpack.c.0.s8 %v2590
        %v2592 = vlaneseq
        %v2593 = vshrl.u32 %v2592, 7
        %v2594 = vsub.s32 %v2591, %v2593
        %v2595 = vrot.slane %v2581, %v2594
        %v2596 = vcombine.low %v2531, %v2547
        %v2597 = vcombine.high %v2531, %v2547
        %v2599 = vunpack.c.l.s4 1934713408
        %v2600 = vunpack.c.0.s8 %v2599
        %v2601 = vlaneseq
        %v2602 = vshrl.u32 %v2601, 7
        %v2603 = vsub.s32 %v2600, %v2602
        %v2604 = vrot.slane %v2596, %v2603
        %v2606 = vunpack.c.l.s4 1934713408
        %v2607 = vunpack.c.0.s8 %v2606
        %v2608 = vlaneseq
        %v2609 = vshrl.u32 %v2608, 7
        %v2610 = vsub.s32 %v2607, %v2609
        %v2611 = vrot.slane %v2597, %v2610
        %v2612 = vcombine.low %v2556, %v2572
        %v2613 = vcombine.high %v2556, %v2572
        %v2615 = vunpack.c.l.s4 1934713408
        %v2616 = vunpack.c.0.s8 %v2615
        %v2617 = vlaneseq
        %v2618 = vshrl.u32 %v2617, 7
        %v2619 = vsub.s32 %v2616, %v2618
        %v2620 = vrot.slane %v2612, %v2619
        %v2622 = vunpack.c.l.s4 1934713408
        %v2623 = vunpack.c.0.s8 %v2622
        %v2624 = vlaneseq
        %v2625 = vshrl.u32 %v2624, 7
        %v2626 = vsub.s32 %v2623, %v2625
        %v2627 = vrot.slane %v2613, %v2626
        %v2628 = vcombine.low %v2563, %v2579
        %v2629 = vcombine.high %v2563, %v2579
        %v2631 = vunpack.c.l.s4 1934713408
        %v2632 = vunpack.c.0.s8 %v2631
        %v2633 = vlaneseq
        %v2634 = vshrl.u32 %v2633, 7
        %v2635 = vsub.s32 %v2632, %v2634
        %v2636 = vrot.slane %v2628, %v2635
        %v2638 = vunpack.c.l.s4 1934713408
        %v2639 = vunpack.c.0.s8 %v2638
        %v2640 = vlaneseq
        %v2641 = vshrl.u32 %v2640, 7
        %v2642 = vsub.s32 %v2639, %v2641
        %v2643 = vrot.slane %v2629, %v2642
        %v2644 = vcombine.low %v2588, %v2620
        %v2645 = vcombine.high %v2588, %v2620
        %v2646 = vcombine.low %v2595, %v2627
        %v2647 = vcombine.high %v2595, %v2627
        %v2648 = vcombine.low %v2604, %v2636
        %v2649 = vcombine.high %v2604, %v2636
        %v2650 = vcombine.low %v2611, %v2643
        %v2651 = vcombine.high %v2611, %v2643
        %v2652 = vcombine.low %v2485, %v2489
        %v2653 = vcombine.high %v2485, %v2489
        %v2655 = vunpack.c.l.s4 1983009808
        %v2656 = vunpack.c.0.s8 %v2655
        %v2657 = vlaneseq
        %v2658 = vshrl.u32 %v2657, 7
        %v2659 = vsub.s32 %v2656, %v2658
        %v2660 = vrot.slane %v2652, %v2659
        %v2662 = vunpack.c.l.s4 1983009808
        %v2663 = vunpack.c.0.s8 %v2662
        %v2664 = vlaneseq
        %v2665 = vshrl.u32 %v2664, 7
        %v2666 = vsub.s32 %v2663, %v2665
        %v2667 = vrot.slane %v2653, %v2666
        %v2668 = vcombine.low %v2487, %v2491
        %v2669 = vcombine.high %v2487, %v2491
        %v2671 = vunpack.c.l.s4 1983009808
        %v2672 = vunpack.c.0.s8 %v2671
        %v2673 = vlaneseq
        %v2674 = vshrl.u32 %v2673, 7
        %v2675 = vsub.s32 %v2672, %v2674
        %v2676 = vrot.slane %v2668, %v2675
        %v2678 = vunpack.c.l.s4 1983009808
        %v2679 = vunpack.c.0.s8 %v2678
        %v2680 = vlaneseq
        %v2681 = vshrl.u32 %v2680, 7
        %v2682 = vsub.s32 %v2679, %v2681
        %v2683 = vrot.slane %v2669, %v2682
        %v2684 = vcombine.low %v2493, %v2497
        %v2685 = vcombine.high %v2493, %v2497
        %v2687 = vunpack.c.l.s4 1983009808
        %v2688 = vunpack.c.0.s8 %v2687
        %v2689 = vlaneseq
        %v2690 = vshrl.u32 %v2689, 7
        %v2691 = vsub.s32 %v2688, %v2690
        %v2692 = vrot.slane %v2684, %v2691
        %v2694 = vunpack.c.l.s4 1983009808
        %v2695 = vunpack.c.0.s8 %v2694
        %v2696 = vlaneseq
        %v2697 = vshrl.u32 %v2696, 7
        %v2698 = vsub.s32 %v2695, %v2697
        %v2699 = vrot.slane %v2685, %v2698
        %v2700 = vcombine.low %v2495, %v2499
        %v2701 = vcombine.high %v2495, %v2499
        %v2703 = vunpack.c.l.s4 1983009808
        %v2704 = vunpack.c.0.s8 %v2703
        %v2705 = vlaneseq
        %v2706 = vshrl.u32 %v2705, 7
        %v2707 = vsub.s32 %v2704, %v2706
        %v2708 = vrot.slane %v2700, %v2707
        %v2710 = vunpack.c.l.s4 1983009808
        %v2711 = vunpack.c.0.s8 %v2710
        %v2712 = vlaneseq
        %v2713 = vshrl.u32 %v2712, 7
        %v2714 = vsub.s32 %v2711, %v2713
        %v2715 = vrot.slane %v2701, %v2714
        %v2716 = vcombine.low %v2660, %v2676
        %v2717 = vcombine.high %v2660, %v2676
        %v2719 = vunpack.c.l.s4 1934713408
        %v2720 = vunpack.c.0.s8 %v2719
        %v2721 = vlaneseq
        %v2722 = vshrl.u32 %v2721, 7
        %v2723 = vsub.s32 %v2720, %v2722
        %v2724 = vrot.slane %v2716, %v2723
        %v2726 = vunpack.c.l.s4 1934713408
        %v2727 = vunpack.c.0.s8 %v2726
        %v2728 = vlaneseq
        %v2729 = vshrl.u32 %v2728, 7
        %v2730 = vsub.s32 %v2727, %v2729
        %v2731 = vrot.slane %v2717, %v2730
        %v2732 = vcombine.low %v2667, %v2683
        %v2733 = vcombine.high %v2667, %v2683
        %v2735 = vunpack.c.l.s4 1934713408
        %v2736 = vunpack.c.0.s8 %v2735
        %v2737 = vlaneseq
        %v2738 = vshrl.u32 %v2737, 7
        %v2739 = vsub.s32 %v2736, %v2738
        %v2740 = vrot.slane %v2732, %v2739
        %v2742 = vunpack.c.l.s4 1934713408
        %v2743 = vunpack.c.0.s8 %v2742
        %v2744 = vlaneseq
        %v2745 = vshrl.u32 %v2744, 7
        %v2746 = vsub.s32 %v2743, %v2745
        %v2747 = vrot.slane %v2733, %v2746
        %v2748 = vcombine.low %v2692, %v2708
        %v2749 = vcombine.high %v2692, %v2708
        %v2751 = vunpack.c.l.s4 1934713408
        %v2752 = vunpack.c.0.s8 %v2751
        %v2753 = vlaneseq
        %v2754 = vshrl.u32 %v2753, 7
        %v2755 = vsub.s32 %v2752, %v2754
        %v2756 = vrot.slane %v2748, %v2755
        %v2758 = vunpack.c.l.s4 1934713408
        %v2759 = vunpack.c.0.s8 %v2758
        %v2760 = vlaneseq
        %v2761 = vshrl.u32 %v2760, 7
        %v2762 = vsub.s32 %v2759, %v2761
        %v2763 = vrot.slane %v2749, %v2762
        %v2764 = vcombine.low %v2699, %v2715
        %v2765 = vcombine.high %v2699, %v2715
        %v2767 = vunpack.c.l.s4 1934713408
        %v2768 = vunpack.c.0.s8 %v2767
        %v2769 = vlaneseq
        %v2770 = vshrl.u32 %v2769, 7
        %v2771 = vsub.s32 %v2768, %v2770
        %v2772 = vrot.slane %v2764, %v2771
        %v2774 = vunpack.c.l.s4 1934713408
        %v2775 = vunpack.c.0.s8 %v2774
        %v2776 = vlaneseq
        %v2777 = vshrl.u32 %v2776, 7
        %v2778 = vsub.s32 %v2775, %v2777
        %v2779 = vrot.slane %v2765, %v2778
        %v2780 = vcombine.low %v2724, %v2756
        %v2781 = vcombine.high %v2724, %v2756
        %v2782 = vcombine.low %v2731, %v2763
        %v2783 = vcombine.high %v2731, %v2763
        %v2784 = vcombine.low %v2740, %v2772
        %v2785 = vcombine.high %v2740, %v2772
        %v2786 = vcombine.low %v2747, %v2779
        %v2787 = vcombine.high %v2747, %v2779
        %2790 = vrot.lane.b32.xlu0 %v2645, 16
        %v2791 = vpop.permute.xlu0 %2790
        %2792 = vrot.lane.b32.xlu0 %v2781, 16
        %v2793 = vpop.permute.xlu0 %2792
        %2798 = vrot.lane.b32.xlu0 %v2646, 32
        %v2799 = vpop.permute.xlu0 %2798
        %2800 = vrot.lane.b32.xlu0 %v2782, 32
        %v2801 = vpop.permute.xlu0 %2800
        %2806 = vrot.lane.b32.xlu0 %v2647, 48
        %v2807 = vpop.permute.xlu0 %2806
        %2808 = vrot.lane.b32.xlu0 %v2783, 48
        %v2809 = vpop.permute.xlu0 %2808
        %2814 = vrot.lane.b32.xlu0 %v2648, 64
        %v2815 = vpop.permute.xlu0 %2814
        %2816 = vrot.lane.b32.xlu0 %v2784, 64
        %v2817 = vpop.permute.xlu0 %2816
        %2822 = vrot.lane.b32.xlu0 %v2649, 80
        %v2823 = vpop.permute.xlu0 %2822
        %2824 = vrot.lane.b32.xlu0 %v2785, 80
        %v2825 = vpop.permute.xlu0 %2824
        %2830 = vrot.lane.b32.xlu0 %v2650, 96
        %v2831 = vpop.permute.xlu0 %2830
        %2832 = vrot.lane.b32.xlu0 %v2786, 96
        %v2833 = vpop.permute.xlu0 %2832
        %2838 = vrot.lane.b32.xlu0 %v2651, 112
        %v2839 = vpop.permute.xlu0 %2838
        %2840 = vrot.lane.b32.xlu0 %v2787, 112
        %v2841 = vpop.permute.xlu0 %2840
        %v2844 = vsel %vm2003, %v2644, %v2791
        %v2845 = vsel %vm2003, %v2780, %v2793
        %v2846 = vsel %vm515, %v2844, %v2799
        %v2847 = vsel %vm515, %v2845, %v2801
        %vm2848 = vcmask 392192
        %v2849 = vsel %vm2848, %v2846, %v2807
        %v2850 = vsel %vm2848, %v2847, %v2809
        %vm2851 = vcmask 523264
        %v2852 = vsel %vm2851, %v2849, %v2815
        %v2853 = vsel %vm2851, %v2850, %v2817
        %vm2854 = vcmask 654336
        %v2855 = vsel %vm2854, %v2852, %v2823
        %v2856 = vsel %vm2854, %v2853, %v2825
        %vm2857 = vcmask 785408
        %v2858 = vsel %vm2857, %v2855, %v2831
        %v2859 = vsel %vm2857, %v2856, %v2833
        %vm2860 = vcmask 916480
        %v2861 = vsel %vm2860, %v2858, %v2839
        %v2862 = vsel %vm2860, %v2859, %v2841
        %2863 = vst [vmem:[%s352] sm:$0xff] %v2861
        %2864 = vst [vmem:[%s352 + $0x8] sm:$0xff] %v2862
        %s2865 = sand.u32 %s247, 1
        %s2866 = scalar_lea.sflag [#allocation3], %s2865
        %s2867 = sand.u32 %s247, 1
        %s2868 = smul.addr %s2867, 16
        %s2869 = scalar_lea.vmem [#allocation2], %s2868
        // Predicated region
        $region61: #{tpu_custom_call.1} parent=59 // pred_check
          %p2870 = pneg %p257
        $region62: #{tpu_custom_call.1} parent=59 // pred_check_branch
          %2872 = sbr.rel (%p2870) target = $region64
        $region63: #{tpu_custom_call.1} parent=59 // pred_region
          %s2874 = ssub.s32 256, 256
          %2875 = vsyncadd %s2866, %s2874
          %s2876 = smul.addr %s24, 2
          %s2877 = smul.addr %s2876, 128
          %s2878 = scalar_lea.hbm %s10, %s2877
          %s2879 = sshll.u32 %s2869, 4
          %s2880 = int_to_ptr.vmem [resolvable:$true] %s2879
          %2885 = dma.vmem_to_hbm [thread:$0]  %s2880, 256, %s2878, %s2866, 128, 128, 8
        $region64: #{tpu_custom_call.1} parent=59 // pred_fallthru
          _
      $region60: #{tpu_custom_call.1} parent=5 // pred_fallthru
        _
      %p2886 = scmp.le.s32.totalorder 2, %s19
      // Predicated region
      $region65: #{tpu_custom_call.1} parent=5 // pred_check
        %p2887 = pneg %p2886
      $region66: #{tpu_custom_call.1} parent=5 // pred_check_branch
        %2889 = sbr.rel (%p2887) target = $region68
      $region67: #{tpu_custom_call.1} parent=5 // pred_region
        %s2890 = ssub.s32 %s19, 2
        // Predicated region
        $region69: #{tpu_custom_call.1} parent=67 // pred_check
          %p2891 = pneg %p263
        $region70: #{tpu_custom_call.1} parent=67 // pred_check_branch
          %2893 = sbr.rel (%p2891) target = $region72
        $region71: #{tpu_custom_call.1} parent=67 // pred_region
          %s2894 = sand.u32 %s248, 1
          %s2895 = scalar_lea.sflag [#allocation3], %s2894
          %s2896 = sand.u32 %s248, 1
          %s2897 = smul.addr %s2896, 16
          %s2898 = scalar_lea.vmem [#allocation2], %s2897
          %2899 = dma.done %s2895, 256
        $region72: #{tpu_custom_call.1} parent=67 // pred_fallthru
          _
      $region68: #{tpu_custom_call.1} parent=5 // pred_fallthru
        _
    $region6: #{tpu_custom_call.1} parent=1 // loop_footer
      %s23 = sadd.s32 1, %s19
    $region7: #{tpu_custom_call.1} parent=1 // loop_footer_branch
      %18 = sbr.rel target = $region3
    $region8: #{tpu_custom_call.1} parent=1 // loop_exit
      _
    %2900 = vsyncpa [#allocation3], 1
    %s2901 = scalar_lea.sflag [#allocation3], 1
    %2902 = vsyncpa %s2901, 1

</llo_original>
